<compile_context>
chip_gen: v7x
topology: tpu7x:2x2x1
jax: 0.10.0
libtpu: 0.0.40
codegen_flags: <defaults>
</compile_context>

<pallas_src>
import functools

import jax
import jax.numpy as jnp
from jax.experimental import pallas as pl
from jax.experimental.pallas import tpu as pltpu

K = 5          # unfold kernel size
STRIDE = 2     # unfold stride
P = K * K      # pixels per patch (25)
EPS = 1e-6     # torch.cosine_similarity eps


def _round_up(x, m):
    return (x + m - 1) // m * m


# ---------------------------------------------------------------------------
# glue: nn.Unfold(kernel_size=(5,5), stride=2) + reshape/permute -> (b, L, 25, c)
# TODO(synk): fuse the unfold into kernel 1 (read the NCHW image directly and
# build the 25-pixel windows inside VMEM) to remove the ~6x HBM read/write
# amplification of materializing the patch tensor.
# ---------------------------------------------------------------------------
def extract_patches(x):
    b, c, h, w = x.shape
    oh = (h - K) // STRIDE + 1
    ow = (w - K) // STRIDE + 1
    cols = []
    for ki in range(K):
        for kj in range(K):
            cols.append(x[:, :, ki:ki + STRIDE * oh:STRIDE,
                             kj:kj + STRIDE * ow:STRIDE])      # (b, c, oh, ow)
    p = jnp.stack(cols, axis=2)                                # (b, c, 25, oh, ow)
    p = p.reshape(b, c, P, oh * ow)                            # (b, c, 25, L)
    p = jnp.transpose(p, (0, 3, 2, 1))                         # (b, L, 25, c)
    return p


# ---------------------------------------------------------------------------
# kernel 1: per-image running max of patch scores
#   x_ref  : (tile, 25, C) f32   block of patches of image i (L-tile j)
#   out_ref: (1, 1)       f32   running max for image i (resident across j)
# ---------------------------------------------------------------------------
def patch_max_kernel(x_ref, out_ref, *, L, tile):
    j = pl.program_id(1)

    @pl.when(j == 0)
    def _init():
        # all true patch scores are >= 0, so 0 is a safe identity for the max
        out_ref[...] = jnp.zeros_like(out_ref)

    x = x_ref[...]                                          # (tile, P, C)
    sumsq = jnp.sum(x * x, axis=-1, keepdims=True)          # (tile, P, 1)
    # 1 / max(||x||, eps) == rsqrt(max(||x||^2, eps^2))  -> EUP, no sqrt+divide
    inv_norm = jax.lax.rsqrt(jnp.maximum(sumsq, EPS * EPS))
    xn = x * inv_norm                                       # (tile, P, C)
    m = jnp.mean(xn, axis=1, keepdims=True)                 # (tile, 1, C)
    d = jnp.sum(xn * m, axis=-1)                            # (tile, P) = xn_p . m
    score = 1.0 - jnp.min(d, axis=-1, keepdims=True)        # (tile, 1)

    # mask padded patch rows (zero-padding would otherwise score 1.0)
    row = jax.lax.broadcasted_iota(jnp.int32, (tile, 1), 0) + j * tile
    score = jnp.where(row < L, score, 0.0)

    tile_max = jnp.max(score, axis=0, keepdims=True)        # (1, 1)
    out_ref[...] = jnp.maximum(out_ref[...], tile_max)


# ---------------------------------------------------------------------------
# kernel 2: label-masked means over the per-image maxima + hinge at 0
#   score_ref: (b, 1) f32,  label_ref: (b, 1) f32 (1=fake, 0=real)
#   out_ref  : (1, 1) f32 in SMEM
# ---------------------------------------------------------------------------
def final_loss_kernel(score_ref, label_ref, out_ref):
    s = score_ref[...]                                      # (b, 1)
    lbl = label_ref[...]                                    # (b, 1)
    fake = lbl
    real = 1.0 - lbl
    # masked_select + mean  ==  mask-weighted sum / mask count
    fake_loss = jnp.sum(s * fake) / jnp.sum(fake)
    real_loss = jnp.sum(s * real) / jnp.sum(real)
    loss = 1.0 - fake_loss + real_loss
    out_ref[0, 0] = jnp.where(loss < 0.0, jnp.float32(0.0), loss)


# ---------------------------------------------------------------------------
# wrapper
# ---------------------------------------------------------------------------
def _choose_tile(L, c, max_tile=512, vmem_budget_bytes=8 * 1024 * 1024):
    # double-buffered input block footprint, counted with padded (8,128) tiles
    padded_row_bytes = _round_up(P, 8) * _round_up(c, 128) * 4
    cap = max(1, vmem_budget_bytes // (2 * padded_row_bytes))
    return int(min(max_tile, cap, L))


def my_loss_max(feature, label, max_tile=512):
    feature = feature.astype(jnp.float32)
    b, c, h, w = feature.shape
    patches = extract_patches(feature)                      # (b, L, 25, c)
    L = patches.shape[1]

    tile = _choose_tile(L, c, max_tile=max_tile)
    L_pad = pl.cdiv(L, tile) * tile
    if L_pad != L:
        patches = jnp.pad(patches, ((0, 0), (0, L_pad - L), (0, 0), (0, 0)))

    per_image_max = pl.pallas_call(
        functools.partial(patch_max_kernel, L=L, tile=tile),
        out_shape=jax.ShapeDtypeStruct((b, 1, 1), jnp.float32),
        grid=(b, L_pad // tile),
        in_specs=[pl.BlockSpec((None, tile, P, c), lambda i, j: (i, j, 0, 0))],
        out_specs=pl.BlockSpec((None, 1, 1), lambda i, j: (i, 0, 0)),
        compiler_params=pltpu.CompilerParams(
            dimension_semantics=("parallel", "arbitrary")),
    )(patches)

    scores_b = per_image_max.reshape(b, 1)                  # glue reshape (b floats)
    label_f = label.astype(jnp.float32).reshape(b, 1)

    loss = pl.pallas_call(
        final_loss_kernel,
        out_shape=jax.ShapeDtypeStruct((1, 1), jnp.float32),
        in_specs=[pl.BlockSpec(memory_space=pltpu.MemorySpace.VMEM),
                  pl.BlockSpec(memory_space=pltpu.MemorySpace.VMEM)],
        out_specs=pl.BlockSpec(memory_space=pltpu.MemorySpace.SMEM),
    )(scores_b, label_f)

    return loss[0, 0]


if __name__ == "__main__":
    key = jax.random.PRNGKey(0)
    k1, _ = jax.random.split(key)
    # b=2, c=4, h=w=16  ->  L = ((16-5)//2 + 1)**2 = 36 patches per image
    feature = jax.random.normal(k1, (2, 4, 16, 16), dtype=jnp.float32)
    label = jnp.array([1, 0], dtype=jnp.int32)   # one fake, one real sample
    out = my_loss_max(feature, label)
    jax.block_until_ready(out)
    print("KERNEL_OK")
</pallas_src>

<mosaic_0001>
module attributes {stable_mosaic.version = 11 : i64} {
  func.func @patch_max_kernel(%arg0: i32, %arg1: i32, %arg2: memref<1x36x25x4xf32, #tpu.memory_space<vmem>>, %arg3: memref<1x1x1xf32, #tpu.memory_space<vmem>>) attributes {dimension_semantics = [#tpu.dimension_semantics<parallel>, #tpu.dimension_semantics<arbitrary>], iteration_bounds = array<i64: 2, 1>, scalar_prefetch = 0 : i64, scratch_operands = 0 : i64, tpu.core_type = #tpu.core_type<tc>, window_params = [{transform_indices = @transform_0, window_bounds = array<i64: 1, 36, 25, 4>}, {transform_indices = @transform_1, window_bounds = array<i64: 1, 1, 1>}]} {
    %c0_i32 = arith.constant 0 : i32
    %0 = arith.cmpi eq, %arg1, %c0_i32 : i32
    %1 = arith.extui %0 : i1 to i32
    %c0_i32_0 = arith.constant 0 : i32
    %2 = arith.cmpi ne, %1, %c0_i32_0 : i32
    scf.if %2 {
      %cst_19 = arith.constant 0.000000e+00 : f32
      %40 = vector.broadcast %cst_19 : f32 to vector<1x1xf32>
      %c0_20 = arith.constant 0 : index
      %c0_21 = arith.constant 0 : index
      %c0_22 = arith.constant 0 : index
      %41 = vector.load %arg3[%c0_20, %c0_21, %c0_22] : memref<1x1x1xf32, #tpu.memory_space<vmem>>, vector<1x1x1xf32>
      %42 = vector.shape_cast %41 : vector<1x1x1xf32> to vector<1x1xf32>
      %43 = vector.shape_cast %40 : vector<1x1xf32> to vector<1x1x1xf32>
      tpu.vector_store %arg3[%c0_20, %c0_21, %c0_22], %43 {strides = array<i32>} : memref<1x1x1xf32, #tpu.memory_space<vmem>>, vector<1x1x1xf32>,
    } else {
    }
    %c0 = arith.constant 0 : index
    %c0_1 = arith.constant 0 : index
    %c0_2 = arith.constant 0 : index
    %c0_3 = arith.constant 0 : index
    %3 = vector.load %arg2[%c0, %c0_1, %c0_2, %c0_3] : memref<1x36x25x4xf32, #tpu.memory_space<vmem>>, vector<1x36x25x4xf32>
    %4 = vector.shape_cast %3 : vector<1x36x25x4xf32> to vector<36x25x4xf32>
    %5 = arith.mulf %4, %4 : vector<36x25x4xf32>
    %cst = arith.constant dense<0.000000e+00> : vector<36x25xf32>
    %6 = vector.multi_reduction <add>, %5, %cst [2] : vector<36x25x4xf32> to vector<36x25xf32>
    %7 = vector.shape_cast %6 : vector<36x25xf32> to vector<36x25x1xf32>
    %cst_4 = arith.constant 9.99999996E-13 : f32
    %8 = vector.broadcast %cst_4 : f32 to vector<36x25x1xf32>
    %9 = arith.maximumf %7, %8 : vector<36x25x1xf32>
    %10 = math.rsqrt %9 : vector<36x25x1xf32>
    %11 = vector.broadcast %10 : vector<36x25x1xf32> to vector<36x25x4xf32>
    %12 = arith.mulf %4, %11 : vector<36x25x4xf32>
    %cst_5 = arith.constant dense<0.000000e+00> : vector<36x4xf32>
    %13 = vector.multi_reduction <add>, %12, %cst_5 [1] : vector<36x25x4xf32> to vector<36x4xf32>
    %14 = vector.shape_cast %13 : vector<36x4xf32> to vector<36x1x4xf32>
    %cst_6 = arith.constant 2.500000e+01 : f32
    %15 = vector.broadcast %cst_6 : f32 to vector<36x1x4xf32>
    %16 = arith.divf %14, %15 : vector<36x1x4xf32>
    %17 = vector.broadcast %16 : vector<36x1x4xf32> to vector<36x25x4xf32>
    %18 = arith.mulf %12, %17 : vector<36x25x4xf32>
    %cst_7 = arith.constant dense<0.000000e+00> : vector<36x25xf32>
    %19 = vector.multi_reduction <add>, %18, %cst_7 [2] : vector<36x25x4xf32> to vector<36x25xf32>
    %cst_8 = arith.constant dense<0x7F800000> : vector<36xf32>
    %20 = vector.multi_reduction <minimumf>, %19, %cst_8 [1] : vector<36x25xf32> to vector<36xf32>
    %21 = vector.shape_cast %20 : vector<36xf32> to vector<36x1xf32>
    %cst_9 = arith.constant 1.000000e+00 : f32
    %22 = vector.broadcast %cst_9 : f32 to vector<36x1xf32>
    %23 = arith.subf %22, %21 : vector<36x1xf32>
    %24 = tpu.iota {dimensions = array<i32: 0>} : vector<36x1xi32>
    %c36_i32 = arith.constant 36 : i32
    %25 = arith.muli %arg1, %c36_i32 : i32
    %26 = vector.broadcast %25 : i32 to vector<36x1xi32>
    %27 = arith.addi %24, %26 : vector<36x1xi32>
    %c36_i32_10 = arith.constant 36 : i32
    %28 = vector.broadcast %c36_i32_10 : i32 to vector<36x1xi32>
    %29 = arith.cmpi slt, %27, %28 : vector<36x1xi32>
    %cst_11 = arith.constant 0.000000e+00 : f32
    %30 = vector.broadcast %cst_11 : f32 to vector<36x1xf32>
    %31 = arith.select %29, %23, %30 : vector<36x1xi1>, vector<36x1xf32>
    %cst_12 = arith.constant dense<0xFF800000> : vector<1xf32>
    %32 = vector.multi_reduction <maximumf>, %31, %cst_12 [0] : vector<36x1xf32> to vector<1xf32>
    %33 = vector.shape_cast %32 : vector<1xf32> to vector<1x1xf32>
    %c0_13 = arith.constant 0 : index
    %c0_14 = arith.constant 0 : index
    %c0_15 = arith.constant 0 : index
    %34 = vector.load %arg3[%c0_13, %c0_14, %c0_15] : memref<1x1x1xf32, #tpu.memory_space<vmem>>, vector<1x1x1xf32>
    %35 = vector.shape_cast %34 : vector<1x1x1xf32> to vector<1x1xf32>
    %36 = arith.maximumf %35, %33 : vector<1x1xf32>
    %c0_16 = arith.constant 0 : index
    %c0_17 = arith.constant 0 : index
    %c0_18 = arith.constant 0 : index
    %37 = vector.load %arg3[%c0_16, %c0_17, %c0_18] : memref<1x1x1xf32, #tpu.memory_space<vmem>>, vector<1x1x1xf32>
    %38 = vector.shape_cast %37 : vector<1x1x1xf32> to vector<1x1xf32>
    %39 = vector.shape_cast %36 : vector<1x1xf32> to vector<1x1x1xf32>
    tpu.vector_store %arg3[%c0_16, %c0_17, %c0_18], %39 {strides = array<i32>} : memref<1x1x1xf32, #tpu.memory_space<vmem>>, vector<1x1x1xf32>,
    return
  }
  func.func @transform_0(%arg0: i32, %arg1: i32) -> (i32, i32, i32, i32) {
    %c0_i32 = arith.constant 0 : i32
    %c0_i32_0 = arith.constant 0 : i32
    %c0_i32_1 = arith.constant 0 : i32
    return %arg0, %arg1, %c0_i32, %c0_i32_0 : i32, i32, i32, i32
  }
  func.func @transform_1(%arg0: i32, %arg1: i32) -> (i32, i32, i32) {
    %c0_i32 = arith.constant 0 : i32
    %c0_i32_0 = arith.constant 0 : i32
    %c0_i32_1 = arith.constant 0 : i32
    return %arg0, %c0_i32, %c0_i32_0 : i32, i32, i32
  }
}

</mosaic_0001>

<llo_original>
// kernel: tpu_custom_call.1
$region0: #{tpu_custom_call.1}
  #allocation0 [shape = 'u32[]', space=smem, size = 0x4, offset = 0x4, fixed_abs, tag = 'smem constant byte address 0x4 - core index']
  #allocation1 [shape = 'u32[144,128]{1,0:T(1,128)}', space=vmem, size = 0x12000, scoped, tag = 'internal scratch']
  %s0 = inlined_call_operand.vmem [shape: f32[2,36,25,4], index: 0, kind: input, shape index: {}]
  %s1 = inlined_call_operand.vmem [shape: f32[2,1,1], index: 1, kind: output, shape index: {}]
  %s2 = sld [smem:[#allocation0]]
  $region41: #{tpu_custom_call.1} parent=0
    _
  %s4 = ssub.s32 1, %s2
  %s5 = scalar_select 0, %s4, %s2
  loop: start=0, step=1, limit=4
  $region2: #{tpu_custom_call.1} parent=0 // loop_pre_header
    _
  $region3: #{tpu_custom_call.1} parent=0 // loop_header
    %s7 = sphi 0, %s11
    %p8 = scmp.ge.s32.totalorder %s7, 4
    %s14 = sphi 0, %s26
    %s15 = sphi 0, %s22
    %s16 = sphi 0, %s14
    %s17 = sphi 0, %s15
    %s18 = sphi 0, %s16
    %s19 = sphi 0, %s17
    %s31 = sphi 0, %s33
    %s34 = sphi 0, %s31
    %s35 = sphi 0, %s34
    %s51 = sphi 0, %s35
    %s57 = sphi 0, %s59
    %s60 = sphi 0, %s57
    %s61 = sphi 0, %s60
    %s77 = sphi 0, %s61
  $region4: #{tpu_custom_call.1} parent=0 // loop_header_branch
    %10 = sbr.rel (%p8) target = $region8
  $region5: #{tpu_custom_call.1} parent=0 // loop_body
    %s12 = ssub.s32 %s7, 1
    %s13 = ssub.s32 %s7, 2
    %s20 = sadd.s32 1, %s15
    %p21 = scmp.ge.s32.totalorder %s20, 1
    %s22 = scalar_select %p21, 0, %s20
    %s23 = sadd.s32 1, %s14
    %s24 = scalar_select %p21, %s23, %s14
    %p25 = scmp.ge.s32.totalorder %s24, 2
    %s26 = scalar_select %p25, 0, %s24
    %s27 = ssub.s32 %s14, %s26
    %s28 = ssub.s32 %s15, %s22
    %s29 = sor.u32 %s27, %s28
    %p30 = scmp.eq.s32.totalorder %s29, 0
    %s32 = sadd.s32 %s31, 1
    %s33 = scalar_select %p30, %s31, %s32
    %p36 = pneg %p30
    %p37 = scmp.eq.s32.totalorder %s7, 1
    %p38 = por %p36, %p37
    %p39 = scmp.ne.s32.totalorder %s31, %s34
    %p40 = scmp.eq.s32.totalorder %s7, 0
    %p41 = por %p39, %p40
    %p42 = scmp.ne.s32.totalorder %s31, %s34
    %p43 = scmp.eq.s32.totalorder %s12, 1
    %p44 = por %p42, %p43
    %p45 = scmp.ne.s32.totalorder %s34, %s35
    %p46 = scmp.eq.s32.totalorder %s12, 0
    %p47 = por %p45, %p46
    %p48 = scmp.ne.s32.totalorder %s34, %s35
    %p49 = scmp.eq.s32.totalorder %s13, 1
    %p50 = por %p48, %p49
    %p52 = scmp.ne.s32.totalorder %s35, %s51
    %p53 = scmp.eq.s32.totalorder %s13, 0
    %p54 = por %p52, %p53
    %s55 = ssub.s32 %s14, %s26
    %p56 = scmp.eq.s32.totalorder %s55, 0
    %s58 = sadd.s32 %s57, 1
    %s59 = scalar_select %p56, %s57, %s58
    %p62 = pneg %p56
    %p63 = scmp.eq.s32.totalorder %s7, 1
    %p64 = por %p62, %p63
    %p65 = scmp.ne.s32.totalorder %s57, %s60
    %p66 = scmp.eq.s32.totalorder %s7, 0
    %p67 = por %p65, %p66
    %p68 = scmp.ne.s32.totalorder %s57, %s60
    %p69 = scmp.eq.s32.totalorder %s12, 1
    %p70 = por %p68, %p69
    %p71 = scmp.ne.s32.totalorder %s60, %s61
    %p72 = scmp.eq.s32.totalorder %s12, 0
    %p73 = por %p71, %p72
    %p74 = scmp.ne.s32.totalorder %s60, %s61
    %p75 = scmp.eq.s32.totalorder %s13, 1
    %p76 = por %p74, %p75
    %p78 = scmp.ne.s32.totalorder %s61, %s77
    %p79 = scmp.eq.s32.totalorder %s13, 0
    %p80 = por %p78, %p79
    %p81 = scmp.le.s32.totalorder 1, %s7
    %p82 = scmp.lt.s32.totalorder %s7, 3
    %p83 = pnand %p81, %p82
    %p84 = pneg %p83
    // Predicated region
    $region9: #{tpu_custom_call.1} parent=5 // pred_check
      _
    $region10: #{tpu_custom_call.1} parent=5 // pred_check_branch
      %86 = sbr.rel (%p83) target = $region12
    $region11: #{tpu_custom_call.1} parent=5 // pred_region
      %s87 = ssub.s32 %s7, 1
    $region12: #{tpu_custom_call.1} parent=5 // pred_fallthru
      _
    %p88 = scmp.lt.s32.totalorder %s7, 2
    // Predicated region
    $region13: #{tpu_custom_call.1} parent=5 // pred_check
      %p89 = pneg %p88
    $region14: #{tpu_custom_call.1} parent=5 // pred_check_branch
      %91 = sbr.rel (%p89) target = $region16
    $region15: #{tpu_custom_call.1} parent=5 // pred_region
      // Predicated region
      $region17: #{tpu_custom_call.1} parent=15 // pred_check
        %p92 = pneg %p41
      $region18: #{tpu_custom_call.1} parent=15 // pred_check_branch
        %94 = sbr.rel (%p92) target = $region20
      $region19: #{tpu_custom_call.1} parent=15 // pred_region
        %s95 = smul.u32 36, %s15
        %p96 = scmp.lt.s32.totalorder %s14, 1
        %s97 = scalar_select %p96, %s14, 1
        %p98 = scmp.lt.s32.totalorder %s95, 35
        %s99 = scalar_select %p98, %s95, 35
        %s100 = smul.addr %s99, 4
        %s101 = smul.addr %s97, 144
        %s102 = sadd.s32 %s100, %s101
        %s103 = smul.addr %s102, 8
        %s104 = scalar_lea.vmem %s0, %s103
        %s105 = smul.u32 36, %s15
      $region20: #{tpu_custom_call.1} parent=15 // pred_fallthru
        _
    $region16: #{tpu_custom_call.1} parent=5 // pred_fallthru
      _
    %p106 = scmp.le.s32.totalorder 1, %s7
    %p107 = scmp.lt.s32.totalorder %s7, 3
    %p108 = pnand %p106, %p107
    %p109 = pneg %p108
    // Predicated region
    $region21: #{tpu_custom_call.1} parent=5 // pred_check
      _
    $region22: #{tpu_custom_call.1} parent=5 // pred_check_branch
      %111 = sbr.rel (%p108) target = $region24
    $region23: #{tpu_custom_call.1} parent=5 // pred_region
      %s112 = ssub.s32 %s7, 1
      %s113 = smul.u32 36, %s17
      %p114 = scmp.lt.s32.totalorder %s16, 1
      %s115 = scalar_select %p114, %s16, 1
      %p116 = scmp.lt.s32.totalorder %s113, 35
      %s117 = scalar_select %p116, %s113, 35
      %s118 = smul.addr %s117, 4
      %s119 = smul.addr %s115, 144
      %s120 = sadd.s32 %s118, %s119
      %s121 = smul.addr %s120, 8
      %s122 = scalar_lea.vmem %s0, %s121
      %p123 = pneg %p47
      %p124 = pneg %p44
      %p125 = pneg %p73
      %p126 = pneg %p70
      %p127 = scmp.lt.s32.totalorder %s16, 1
      %s128 = scalar_select %p127, %s16, 1
      %s129 = scalar_lea.vmem %s1, %s128
      %s130 = smul.u32 36, %s17
      %p131 = scmp.lt.s32.totalorder %s16, 1
      %s132 = scalar_select %p131, %s16, 1
      %p133 = scmp.lt.s32.totalorder %s130, 35
      %s134 = scalar_select %p133, %s130, 35
      %s135 = smul.addr %s134, 4
      %s136 = smul.addr %s132, 144
      %s137 = sadd.s32 %s135, %s136
      %s138 = smul.addr %s137, 8
      %s139 = scalar_lea.vmem %s0, %s138
      %s140 = smul.u32 36, %s17
      %p141 = scmp.lt.s32.totalorder %s16, 1
      %s142 = scalar_select %p141, %s16, 1
      %s143 = scalar_lea.vmem %s1, %s142
      %p144 = scmp.eq.s32.totalorder %s17, 0
      // Predicated region
      $region25: #{tpu_custom_call.1} parent=23 // pred_check
        %p145 = pneg %p144
      $region26: #{tpu_custom_call.1} parent=23 // pred_check_branch
        %147 = sbr.rel (%p145) target = $region28
      $region27: #{tpu_custom_call.1} parent=23 // pred_region
        %vm148 = vcmask 0
        %149 = vst.msk [vmem:[%s143] sm:$0x1] %vm148, 0.0
      $region28: #{tpu_custom_call.1} parent=23 // pred_fallthru
        _
      %v150 = vld [vmem:[%s139] sm:$0xff]
      %v151 = vld [vmem:[%s139 + $0x8] sm:$0xff]
      %v152 = vld [vmem:[%s139 + $0x10] sm:$0xff]
      %v153 = vld [vmem:[%s139 + $0x18] sm:$0x1]
      %v154 = vld [vmem:[%s139 + $0x20] sm:$0xff]
      %v155 = vld [vmem:[%s139 + $0x28] sm:$0xff]
      %v156 = vld [vmem:[%s139 + $0x30] sm:$0xff]
      %v157 = vld [vmem:[%s139 + $0x38] sm:$0x1]
      %v158 = vld [vmem:[%s139 + $0x40] sm:$0xff]
      %v159 = vld [vmem:[%s139 + $0x48] sm:$0xff]
      %v160 = vld [vmem:[%s139 + $0x50] sm:$0xff]
      %v161 = vld [vmem:[%s139 + $0x58] sm:$0x1]
      %v162 = vld [vmem:[%s139 + $0x60] sm:$0xff]
      %v163 = vld [vmem:[%s139 + $0x68] sm:$0xff]
      %v164 = vld [vmem:[%s139 + $0x70] sm:$0xff]
      %v165 = vld [vmem:[%s139 + $0x78] sm:$0x1]
      %v166 = vld [vmem:[%s139 + $0x80] sm:$0xff]
      %v167 = vld [vmem:[%s139 + $0x88] sm:$0xff]
      %v168 = vld [vmem:[%s139 + $0x90] sm:$0xff]
      %v169 = vld [vmem:[%s139 + $0x98] sm:$0x1]
      %v170 = vld [vmem:[%s139 + $0xa0] sm:$0xff]
      %v171 = vld [vmem:[%s139 + $0xa8] sm:$0xff]
      %v172 = vld [vmem:[%s139 + $0xb0] sm:$0xff]
      %v173 = vld [vmem:[%s139 + $0xb8] sm:$0x1]
      %v174 = vld [vmem:[%s139 + $0xc0] sm:$0xff]
      %v175 = vld [vmem:[%s139 + $0xc8] sm:$0xff]
      %v176 = vld [vmem:[%s139 + $0xd0] sm:$0xff]
      %v177 = vld [vmem:[%s139 + $0xd8] sm:$0x1]
      %v178 = vld [vmem:[%s139 + $0xe0] sm:$0xff]
      %v179 = vld [vmem:[%s139 + $0xe8] sm:$0xff]
      %v180 = vld [vmem:[%s139 + $0xf0] sm:$0xff]
      %v181 = vld [vmem:[%s139 + $0xf8] sm:$0x1]
      %v182 = vld [vmem:[%s139 + $0x100] sm:$0xff]
      %v183 = vld [vmem:[%s139 + $0x108] sm:$0xff]
      %v184 = vld [vmem:[%s139 + $0x110] sm:$0xff]
      %v185 = vld [vmem:[%s139 + $0x118] sm:$0x1]
      %v186 = vld [vmem:[%s139 + $0x120] sm:$0xff]
      %v187 = vld [vmem:[%s139 + $0x128] sm:$0xff]
      %v188 = vld [vmem:[%s139 + $0x130] sm:$0xff]
      %v189 = vld [vmem:[%s139 + $0x138] sm:$0x1]
      %v190 = vld [vmem:[%s139 + $0x140] sm:$0xff]
      %v191 = vld [vmem:[%s139 + $0x148] sm:$0xff]
      %v192 = vld [vmem:[%s139 + $0x150] sm:$0xff]
      %v193 = vld [vmem:[%s139 + $0x158] sm:$0x1]
      %v194 = vld [vmem:[%s139 + $0x160] sm:$0xff]
      %v195 = vld [vmem:[%s139 + $0x168] sm:$0xff]
      %v196 = vld [vmem:[%s139 + $0x170] sm:$0xff]
      %v197 = vld [vmem:[%s139 + $0x178] sm:$0x1]
      %v198 = vld [vmem:[%s139 + $0x180] sm:$0xff]
      %v199 = vld [vmem:[%s139 + $0x188] sm:$0xff]
      %v200 = vld [vmem:[%s139 + $0x190] sm:$0xff]
      %v201 = vld [vmem:[%s139 + $0x198] sm:$0x1]
      %v202 = vld [vmem:[%s139 + $0x1a0] sm:$0xff]
      %v203 = vld [vmem:[%s139 + $0x1a8] sm:$0xff]
      %v204 = vld [vmem:[%s139 + $0x1b0] sm:$0xff]
      %v205 = vld [vmem:[%s139 + $0x1b8] sm:$0x1]
      %v206 = vld [vmem:[%s139 + $0x1c0] sm:$0xff]
      %v207 = vld [vmem:[%s139 + $0x1c8] sm:$0xff]
      %v208 = vld [vmem:[%s139 + $0x1d0] sm:$0xff]
      %v209 = vld [vmem:[%s139 + $0x1d8] sm:$0x1]
      %v210 = vld [vmem:[%s139 + $0x1e0] sm:$0xff]
      %v211 = vld [vmem:[%s139 + $0x1e8] sm:$0xff]
      %v212 = vld [vmem:[%s139 + $0x1f0] sm:$0xff]
      %v213 = vld [vmem:[%s139 + $0x1f8] sm:$0x1]
      %v214 = vld [vmem:[%s139 + $0x200] sm:$0xff]
      %v215 = vld [vmem:[%s139 + $0x208] sm:$0xff]
      %v216 = vld [vmem:[%s139 + $0x210] sm:$0xff]
      %v217 = vld [vmem:[%s139 + $0x218] sm:$0x1]
      %v218 = vld [vmem:[%s139 + $0x220] sm:$0xff]
      %v219 = vld [vmem:[%s139 + $0x228] sm:$0xff]
      %v220 = vld [vmem:[%s139 + $0x230] sm:$0xff]
      %v221 = vld [vmem:[%s139 + $0x238] sm:$0x1]
      %v222 = vld [vmem:[%s139 + $0x240] sm:$0xff]
      %v223 = vld [vmem:[%s139 + $0x248] sm:$0xff]
      %v224 = vld [vmem:[%s139 + $0x250] sm:$0xff]
      %v225 = vld [vmem:[%s139 + $0x258] sm:$0x1]
      %v226 = vld [vmem:[%s139 + $0x260] sm:$0xff]
      %v227 = vld [vmem:[%s139 + $0x268] sm:$0xff]
      %v228 = vld [vmem:[%s139 + $0x270] sm:$0xff]
      %v229 = vld [vmem:[%s139 + $0x278] sm:$0x1]
      %v230 = vld [vmem:[%s139 + $0x280] sm:$0xff]
      %v231 = vld [vmem:[%s139 + $0x288] sm:$0xff]
      %v232 = vld [vmem:[%s139 + $0x290] sm:$0xff]
      %v233 = vld [vmem:[%s139 + $0x298] sm:$0x1]
      %v234 = vld [vmem:[%s139 + $0x2a0] sm:$0xff]
      %v235 = vld [vmem:[%s139 + $0x2a8] sm:$0xff]
      %v236 = vld [vmem:[%s139 + $0x2b0] sm:$0xff]
      %v237 = vld [vmem:[%s139 + $0x2b8] sm:$0x1]
      %v238 = vld [vmem:[%s139 + $0x2c0] sm:$0xff]
      %v239 = vld [vmem:[%s139 + $0x2c8] sm:$0xff]
      %v240 = vld [vmem:[%s139 + $0x2d0] sm:$0xff]
      %v241 = vld [vmem:[%s139 + $0x2d8] sm:$0x1]
      %v242 = vld [vmem:[%s139 + $0x2e0] sm:$0xff]
      %v243 = vld [vmem:[%s139 + $0x2e8] sm:$0xff]
      %v244 = vld [vmem:[%s139 + $0x2f0] sm:$0xff]
      %v245 = vld [vmem:[%s139 + $0x2f8] sm:$0x1]
      %v246 = vld [vmem:[%s139 + $0x300] sm:$0xff]
      %v247 = vld [vmem:[%s139 + $0x308] sm:$0xff]
      %v248 = vld [vmem:[%s139 + $0x310] sm:$0xff]
      %v249 = vld [vmem:[%s139 + $0x318] sm:$0x1]
      %v250 = vld [vmem:[%s139 + $0x320] sm:$0xff]
      %v251 = vld [vmem:[%s139 + $0x328] sm:$0xff]
      %v252 = vld [vmem:[%s139 + $0x330] sm:$0xff]
      %v253 = vld [vmem:[%s139 + $0x338] sm:$0x1]
      %v254 = vld [vmem:[%s139 + $0x340] sm:$0xff]
      %v255 = vld [vmem:[%s139 + $0x348] sm:$0xff]
      %v256 = vld [vmem:[%s139 + $0x350] sm:$0xff]
      %v257 = vld [vmem:[%s139 + $0x358] sm:$0x1]
      %v258 = vld [vmem:[%s139 + $0x360] sm:$0xff]
      %v259 = vld [vmem:[%s139 + $0x368] sm:$0xff]
      %v260 = vld [vmem:[%s139 + $0x370] sm:$0xff]
      %v261 = vld [vmem:[%s139 + $0x378] sm:$0x1]
      %v262 = vld [vmem:[%s139 + $0x380] sm:$0xff]
      %v263 = vld [vmem:[%s139 + $0x388] sm:$0xff]
      %v264 = vld [vmem:[%s139 + $0x390] sm:$0xff]
      %v265 = vld [vmem:[%s139 + $0x398] sm:$0x1]
      %v266 = vld [vmem:[%s139 + $0x3a0] sm:$0xff]
      %v267 = vld [vmem:[%s139 + $0x3a8] sm:$0xff]
      %v268 = vld [vmem:[%s139 + $0x3b0] sm:$0xff]
      %v269 = vld [vmem:[%s139 + $0x3b8] sm:$0x1]
      %v270 = vld [vmem:[%s139 + $0x3c0] sm:$0xff]
      %v271 = vld [vmem:[%s139 + $0x3c8] sm:$0xff]
      %v272 = vld [vmem:[%s139 + $0x3d0] sm:$0xff]
      %v273 = vld [vmem:[%s139 + $0x3d8] sm:$0x1]
      %v274 = vld [vmem:[%s139 + $0x3e0] sm:$0xff]
      %v275 = vld [vmem:[%s139 + $0x3e8] sm:$0xff]
      %v276 = vld [vmem:[%s139 + $0x3f0] sm:$0xff]
      %v277 = vld [vmem:[%s139 + $0x3f8] sm:$0x1]
      %v278 = vld [vmem:[%s139 + $0x400] sm:$0xff]
      %v279 = vld [vmem:[%s139 + $0x408] sm:$0xff]
      %v280 = vld [vmem:[%s139 + $0x410] sm:$0xff]
      %v281 = vld [vmem:[%s139 + $0x418] sm:$0x1]
      %v282 = vld [vmem:[%s139 + $0x420] sm:$0xff]
      %v283 = vld [vmem:[%s139 + $0x428] sm:$0xff]
      %v284 = vld [vmem:[%s139 + $0x430] sm:$0xff]
      %v285 = vld [vmem:[%s139 + $0x438] sm:$0x1]
      %v286 = vld [vmem:[%s139 + $0x440] sm:$0xff]
      %v287 = vld [vmem:[%s139 + $0x448] sm:$0xff]
      %v288 = vld [vmem:[%s139 + $0x450] sm:$0xff]
      %v289 = vld [vmem:[%s139 + $0x458] sm:$0x1]
      %v290 = vld [vmem:[%s139 + $0x460] sm:$0xff]
      %v291 = vld [vmem:[%s139 + $0x468] sm:$0xff]
      %v292 = vld [vmem:[%s139 + $0x470] sm:$0xff]
      %v293 = vld [vmem:[%s139 + $0x478] sm:$0x1]
      %v294 = vmul.f32 %v150, %v150
      %v295 = vmul.f32 %v151, %v151
      %v296 = vmul.f32 %v152, %v152
      %v297 = vmul.f32 %v153, %v153
      %v298 = vmul.f32 %v154, %v154
      %v299 = vmul.f32 %v155, %v155
      %v300 = vmul.f32 %v156, %v156
      %v301 = vmul.f32 %v157, %v157
      %v302 = vmul.f32 %v158, %v158
      %v303 = vmul.f32 %v159, %v159
      %v304 = vmul.f32 %v160, %v160
      %v305 = vmul.f32 %v161, %v161
      %v306 = vmul.f32 %v162, %v162
      %v307 = vmul.f32 %v163, %v163
      %v308 = vmul.f32 %v164, %v164
      %v309 = vmul.f32 %v165, %v165
      %v310 = vmul.f32 %v166, %v166
      %v311 = vmul.f32 %v167, %v167
      %v312 = vmul.f32 %v168, %v168
      %v313 = vmul.f32 %v169, %v169
      %v314 = vmul.f32 %v170, %v170
      %v315 = vmul.f32 %v171, %v171
      %v316 = vmul.f32 %v172, %v172
      %v317 = vmul.f32 %v173, %v173
      %v318 = vmul.f32 %v174, %v174
      %v319 = vmul.f32 %v175, %v175
      %v320 = vmul.f32 %v176, %v176
      %v321 = vmul.f32 %v177, %v177
      %v322 = vmul.f32 %v178, %v178
      %v323 = vmul.f32 %v179, %v179
      %v324 = vmul.f32 %v180, %v180
      %v325 = vmul.f32 %v181, %v181
      %v326 = vmul.f32 %v182, %v182
      %v327 = vmul.f32 %v183, %v183
      %v328 = vmul.f32 %v184, %v184
      %v329 = vmul.f32 %v185, %v185
      %v330 = vmul.f32 %v186, %v186
      %v331 = vmul.f32 %v187, %v187
      %v332 = vmul.f32 %v188, %v188
      %v333 = vmul.f32 %v189, %v189
      %v334 = vmul.f32 %v190, %v190
      %v335 = vmul.f32 %v191, %v191
      %v336 = vmul.f32 %v192, %v192
      %v337 = vmul.f32 %v193, %v193
      %v338 = vmul.f32 %v194, %v194
      %v339 = vmul.f32 %v195, %v195
      %v340 = vmul.f32 %v196, %v196
      %v341 = vmul.f32 %v197, %v197
      %v342 = vmul.f32 %v198, %v198
      %v343 = vmul.f32 %v199, %v199
      %v344 = vmul.f32 %v200, %v200
      %v345 = vmul.f32 %v201, %v201
      %v346 = vmul.f32 %v202, %v202
      %v347 = vmul.f32 %v203, %v203
      %v348 = vmul.f32 %v204, %v204
      %v349 = vmul.f32 %v205, %v205
      %v350 = vmul.f32 %v206, %v206
      %v351 = vmul.f32 %v207, %v207
      %v352 = vmul.f32 %v208, %v208
      %v353 = vmul.f32 %v209, %v209
      %v354 = vmul.f32 %v210, %v210
      %v355 = vmul.f32 %v211, %v211
      %v356 = vmul.f32 %v212, %v212
      %v357 = vmul.f32 %v213, %v213
      %v358 = vmul.f32 %v214, %v214
      %v359 = vmul.f32 %v215, %v215
      %v360 = vmul.f32 %v216, %v216
      %v361 = vmul.f32 %v217, %v217
      %v362 = vmul.f32 %v218, %v218
      %v363 = vmul.f32 %v219, %v219
      %v364 = vmul.f32 %v220, %v220
      %v365 = vmul.f32 %v221, %v221
      %v366 = vmul.f32 %v222, %v222
      %v367 = vmul.f32 %v223, %v223
      %v368 = vmul.f32 %v224, %v224
      %v369 = vmul.f32 %v225, %v225
      %v370 = vmul.f32 %v226, %v226
      %v371 = vmul.f32 %v227, %v227
      %v372 = vmul.f32 %v228, %v228
      %v373 = vmul.f32 %v229, %v229
      %v374 = vmul.f32 %v230, %v230
      %v375 = vmul.f32 %v231, %v231
      %v376 = vmul.f32 %v232, %v232
      %v377 = vmul.f32 %v233, %v233
      %v378 = vmul.f32 %v234, %v234
      %v379 = vmul.f32 %v235, %v235
      %v380 = vmul.f32 %v236, %v236
      %v381 = vmul.f32 %v237, %v237
      %v382 = vmul.f32 %v238, %v238
      %v383 = vmul.f32 %v239, %v239
      %v384 = vmul.f32 %v240, %v240
      %v385 = vmul.f32 %v241, %v241
      %v386 = vmul.f32 %v242, %v242
      %v387 = vmul.f32 %v243, %v243
      %v388 = vmul.f32 %v244, %v244
      %v389 = vmul.f32 %v245, %v245
      %v390 = vmul.f32 %v246, %v246
      %v391 = vmul.f32 %v247, %v247
      %v392 = vmul.f32 %v248, %v248
      %v393 = vmul.f32 %v249, %v249
      %v394 = vmul.f32 %v250, %v250
      %v395 = vmul.f32 %v251, %v251
      %v396 = vmul.f32 %v252, %v252
      %v397 = vmul.f32 %v253, %v253
      %v398 = vmul.f32 %v254, %v254
      %v399 = vmul.f32 %v255, %v255
      %v400 = vmul.f32 %v256, %v256
      %v401 = vmul.f32 %v257, %v257
      %v402 = vmul.f32 %v258, %v258
      %v403 = vmul.f32 %v259, %v259
      %v404 = vmul.f32 %v260, %v260
      %v405 = vmul.f32 %v261, %v261
      %v406 = vmul.f32 %v262, %v262
      %v407 = vmul.f32 %v263, %v263
      %v408 = vmul.f32 %v264, %v264
      %v409 = vmul.f32 %v265, %v265
      %v410 = vmul.f32 %v266, %v266
      %v411 = vmul.f32 %v267, %v267
      %v412 = vmul.f32 %v268, %v268
      %v413 = vmul.f32 %v269, %v269
      %v414 = vmul.f32 %v270, %v270
      %v415 = vmul.f32 %v271, %v271
      %v416 = vmul.f32 %v272, %v272
      %v417 = vmul.f32 %v273, %v273
      %v418 = vmul.f32 %v274, %v274
      %v419 = vmul.f32 %v275, %v275
      %v420 = vmul.f32 %v276, %v276
      %v421 = vmul.f32 %v277, %v277
      %v422 = vmul.f32 %v278, %v278
      %v423 = vmul.f32 %v279, %v279
      %v424 = vmul.f32 %v280, %v280
      %v425 = vmul.f32 %v281, %v281
      %v426 = vmul.f32 %v282, %v282
      %v427 = vmul.f32 %v283, %v283
      %v428 = vmul.f32 %v284, %v284
      %v429 = vmul.f32 %v285, %v285
      %v430 = vmul.f32 %v286, %v286
      %v431 = vmul.f32 %v287, %v287
      %v432 = vmul.f32 %v288, %v288
      %v433 = vmul.f32 %v289, %v289
      %v434 = vmul.f32 %v290, %v290
      %v435 = vmul.f32 %v291, %v291
      %v436 = vmul.f32 %v292, %v292
      %v437 = vmul.f32 %v293, %v293
      %vm438 = vcmask 31744
      %v439 = vsel %vm438, %v294, 0.0
      %440 = vadd.xlane.f32.xlu0 %v439
      %v441 = vpop.xlane.xlu0 %440
      %v442 = vsel %vm438, %v295, 0.0
      %443 = vadd.xlane.f32.xlu0 %v442
      %v444 = vpop.xlane.xlu0 %443
      %v445 = vsel %vm438, %v296, 0.0
      %446 = vadd.xlane.f32.xlu0 %v445
      %v447 = vpop.xlane.xlu0 %446
      %vm448 = vcmask 24576
      %v449 = vsel %vm448, %v297, 0.0
      %450 = vadd.xlane.f32.xlu0 %v449
      %v451 = vpop.xlane.xlu0 %450
      %v452 = vsel %vm438, %v298, 0.0
      %453 = vadd.xlane.f32.xlu0 %v452
      %v454 = vpop.xlane.xlu0 %453
      %v455 = vsel %vm438, %v299, 0.0
      %456 = vadd.xlane.f32.xlu0 %v455
      %v457 = vpop.xlane.xlu0 %456
      %v458 = vsel %vm438, %v300, 0.0
      %459 = vadd.xlane.f32.xlu0 %v458
      %v460 = vpop.xlane.xlu0 %459
      %v461 = vsel %vm448, %v301, 0.0
      %462 = vadd.xlane.f32.xlu0 %v461
      %v463 = vpop.xlane.xlu0 %462
      %v464 = vsel %vm438, %v302, 0.0
      %465 = vadd.xlane.f32.xlu0 %v464
      %v466 = vpop.xlane.xlu0 %465
      %v467 = vsel %vm438, %v303, 0.0
      %468 = vadd.xlane.f32.xlu0 %v467
      %v469 = vpop.xlane.xlu0 %468
      %v470 = vsel %vm438, %v304, 0.0
      %471 = vadd.xlane.f32.xlu0 %v470
      %v472 = vpop.xlane.xlu0 %471
      %v473 = vsel %vm448, %v305, 0.0
      %474 = vadd.xlane.f32.xlu0 %v473
      %v475 = vpop.xlane.xlu0 %474
      %v476 = vsel %vm438, %v306, 0.0
      %477 = vadd.xlane.f32.xlu0 %v476
      %v478 = vpop.xlane.xlu0 %477
      %v479 = vsel %vm438, %v307, 0.0
      %480 = vadd.xlane.f32.xlu0 %v479
      %v481 = vpop.xlane.xlu0 %480
      %v482 = vsel %vm438, %v308, 0.0
      %483 = vadd.xlane.f32.xlu0 %v482
      %v484 = vpop.xlane.xlu0 %483
      %v485 = vsel %vm448, %v309, 0.0
      %486 = vadd.xlane.f32.xlu0 %v485
      %v487 = vpop.xlane.xlu0 %486
      %v488 = vsel %vm438, %v310, 0.0
      %489 = vadd.xlane.f32.xlu0 %v488
      %v490 = vpop.xlane.xlu0 %489
      %v491 = vsel %vm438, %v311, 0.0
      %492 = vadd.xlane.f32.xlu0 %v491
      %v493 = vpop.xlane.xlu0 %492
      %v494 = vsel %vm438, %v312, 0.0
      %495 = vadd.xlane.f32.xlu0 %v494
      %v496 = vpop.xlane.xlu0 %495
      %v497 = vsel %vm448, %v313, 0.0
      %498 = vadd.xlane.f32.xlu0 %v497
      %v499 = vpop.xlane.xlu0 %498
      %v500 = vsel %vm438, %v314, 0.0
      %501 = vadd.xlane.f32.xlu0 %v500
      %v502 = vpop.xlane.xlu0 %501
      %v503 = vsel %vm438, %v315, 0.0
      %504 = vadd.xlane.f32.xlu0 %v503
      %v505 = vpop.xlane.xlu0 %504
      %v506 = vsel %vm438, %v316, 0.0
      %507 = vadd.xlane.f32.xlu0 %v506
      %v508 = vpop.xlane.xlu0 %507
      %v509 = vsel %vm448, %v317, 0.0
      %510 = vadd.xlane.f32.xlu0 %v509
      %v511 = vpop.xlane.xlu0 %510
      %v512 = vsel %vm438, %v318, 0.0
      %513 = vadd.xlane.f32.xlu0 %v512
      %v514 = vpop.xlane.xlu0 %513
      %v515 = vsel %vm438, %v319, 0.0
      %516 = vadd.xlane.f32.xlu0 %v515
      %v517 = vpop.xlane.xlu0 %516
      %v518 = vsel %vm438, %v320, 0.0
      %519 = vadd.xlane.f32.xlu0 %v518
      %v520 = vpop.xlane.xlu0 %519
      %v521 = vsel %vm448, %v321, 0.0
      %522 = vadd.xlane.f32.xlu0 %v521
      %v523 = vpop.xlane.xlu0 %522
      %v524 = vsel %vm438, %v322, 0.0
      %525 = vadd.xlane.f32.xlu0 %v524
      %v526 = vpop.xlane.xlu0 %525
      %v527 = vsel %vm438, %v323, 0.0
      %528 = vadd.xlane.f32.xlu0 %v527
      %v529 = vpop.xlane.xlu0 %528
      %v530 = vsel %vm438, %v324, 0.0
      %531 = vadd.xlane.f32.xlu0 %v530
      %v532 = vpop.xlane.xlu0 %531
      %v533 = vsel %vm448, %v325, 0.0
      %534 = vadd.xlane.f32.xlu0 %v533
      %v535 = vpop.xlane.xlu0 %534
      %v536 = vsel %vm438, %v326, 0.0
      %537 = vadd.xlane.f32.xlu0 %v536
      %v538 = vpop.xlane.xlu0 %537
      %v539 = vsel %vm438, %v327, 0.0
      %540 = vadd.xlane.f32.xlu0 %v539
      %v541 = vpop.xlane.xlu0 %540
      %v542 = vsel %vm438, %v328, 0.0
      %543 = vadd.xlane.f32.xlu0 %v542
      %v544 = vpop.xlane.xlu0 %543
      %v545 = vsel %vm448, %v329, 0.0
      %546 = vadd.xlane.f32.xlu0 %v545
      %v547 = vpop.xlane.xlu0 %546
      %v548 = vsel %vm438, %v330, 0.0
      %549 = vadd.xlane.f32.xlu0 %v548
      %v550 = vpop.xlane.xlu0 %549
      %v551 = vsel %vm438, %v331, 0.0
      %552 = vadd.xlane.f32.xlu0 %v551
      %v553 = vpop.xlane.xlu0 %552
      %v554 = vsel %vm438, %v332, 0.0
      %555 = vadd.xlane.f32.xlu0 %v554
      %v556 = vpop.xlane.xlu0 %555
      %v557 = vsel %vm448, %v333, 0.0
      %558 = vadd.xlane.f32.xlu0 %v557
      %v559 = vpop.xlane.xlu0 %558
      %v560 = vsel %vm438, %v334, 0.0
      %561 = vadd.xlane.f32.xlu0 %v560
      %v562 = vpop.xlane.xlu0 %561
      %v563 = vsel %vm438, %v335, 0.0
      %564 = vadd.xlane.f32.xlu0 %v563
      %v565 = vpop.xlane.xlu0 %564
      %v566 = vsel %vm438, %v336, 0.0
      %567 = vadd.xlane.f32.xlu0 %v566
      %v568 = vpop.xlane.xlu0 %567
      %v569 = vsel %vm448, %v337, 0.0
      %570 = vadd.xlane.f32.xlu0 %v569
      %v571 = vpop.xlane.xlu0 %570
      %v572 = vsel %vm438, %v338, 0.0
      %573 = vadd.xlane.f32.xlu0 %v572
      %v574 = vpop.xlane.xlu0 %573
      %v575 = vsel %vm438, %v339, 0.0
      %576 = vadd.xlane.f32.xlu0 %v575
      %v577 = vpop.xlane.xlu0 %576
      %v578 = vsel %vm438, %v340, 0.0
      %579 = vadd.xlane.f32.xlu0 %v578
      %v580 = vpop.xlane.xlu0 %579
      %v581 = vsel %vm448, %v341, 0.0
      %582 = vadd.xlane.f32.xlu0 %v581
      %v583 = vpop.xlane.xlu0 %582
      %v584 = vsel %vm438, %v342, 0.0
      %585 = vadd.xlane.f32.xlu0 %v584
      %v586 = vpop.xlane.xlu0 %585
      %v587 = vsel %vm438, %v343, 0.0
      %588 = vadd.xlane.f32.xlu0 %v587
      %v589 = vpop.xlane.xlu0 %588
      %v590 = vsel %vm438, %v344, 0.0
      %591 = vadd.xlane.f32.xlu0 %v590
      %v592 = vpop.xlane.xlu0 %591
      %v593 = vsel %vm448, %v345, 0.0
      %594 = vadd.xlane.f32.xlu0 %v593
      %v595 = vpop.xlane.xlu0 %594
      %v596 = vsel %vm438, %v346, 0.0
      %597 = vadd.xlane.f32.xlu0 %v596
      %v598 = vpop.xlane.xlu0 %597
      %v599 = vsel %vm438, %v347, 0.0
      %600 = vadd.xlane.f32.xlu0 %v599
      %v601 = vpop.xlane.xlu0 %600
      %v602 = vsel %vm438, %v348, 0.0
      %603 = vadd.xlane.f32.xlu0 %v602
      %v604 = vpop.xlane.xlu0 %603
      %v605 = vsel %vm448, %v349, 0.0
      %606 = vadd.xlane.f32.xlu0 %v605
      %v607 = vpop.xlane.xlu0 %606
      %v608 = vsel %vm438, %v350, 0.0
      %609 = vadd.xlane.f32.xlu0 %v608
      %v610 = vpop.xlane.xlu0 %609
      %v611 = vsel %vm438, %v351, 0.0
      %612 = vadd.xlane.f32.xlu0 %v611
      %v613 = vpop.xlane.xlu0 %612
      %v614 = vsel %vm438, %v352, 0.0
      %615 = vadd.xlane.f32.xlu0 %v614
      %v616 = vpop.xlane.xlu0 %615
      %v617 = vsel %vm448, %v353, 0.0
      %618 = vadd.xlane.f32.xlu0 %v617
      %v619 = vpop.xlane.xlu0 %618
      %v620 = vsel %vm438, %v354, 0.0
      %621 = vadd.xlane.f32.xlu0 %v620
      %v622 = vpop.xlane.xlu0 %621
      %v623 = vsel %vm438, %v355, 0.0
      %624 = vadd.xlane.f32.xlu0 %v623
      %v625 = vpop.xlane.xlu0 %624
      %v626 = vsel %vm438, %v356, 0.0
      %627 = vadd.xlane.f32.xlu0 %v626
      %v628 = vpop.xlane.xlu0 %627
      %v629 = vsel %vm448, %v357, 0.0
      %630 = vadd.xlane.f32.xlu0 %v629
      %v631 = vpop.xlane.xlu0 %630
      %v632 = vsel %vm438, %v358, 0.0
      %633 = vadd.xlane.f32.xlu0 %v632
      %v634 = vpop.xlane.xlu0 %633
      %v635 = vsel %vm438, %v359, 0.0
      %636 = vadd.xlane.f32.xlu0 %v635
      %v637 = vpop.xlane.xlu0 %636
      %v638 = vsel %vm438, %v360, 0.0
      %639 = vadd.xlane.f32.xlu0 %v638
      %v640 = vpop.xlane.xlu0 %639
      %v641 = vsel %vm448, %v361, 0.0
      %642 = vadd.xlane.f32.xlu0 %v641
      %v643 = vpop.xlane.xlu0 %642
      %v644 = vsel %vm438, %v362, 0.0
      %645 = vadd.xlane.f32.xlu0 %v644
      %v646 = vpop.xlane.xlu0 %645
      %v647 = vsel %vm438, %v363, 0.0
      %648 = vadd.xlane.f32.xlu0 %v647
      %v649 = vpop.xlane.xlu0 %648
      %v650 = vsel %vm438, %v364, 0.0
      %651 = vadd.xlane.f32.xlu0 %v650
      %v652 = vpop.xlane.xlu0 %651
      %v653 = vsel %vm448, %v365, 0.0
      %654 = vadd.xlane.f32.xlu0 %v653
      %v655 = vpop.xlane.xlu0 %654
      %v656 = vsel %vm438, %v366, 0.0
      %657 = vadd.xlane.f32.xlu0 %v656
      %v658 = vpop.xlane.xlu0 %657
      %v659 = vsel %vm438, %v367, 0.0
      %660 = vadd.xlane.f32.xlu0 %v659
      %v661 = vpop.xlane.xlu0 %660
      %v662 = vsel %vm438, %v368, 0.0
      %663 = vadd.xlane.f32.xlu0 %v662
      %v664 = vpop.xlane.xlu0 %663
      %v665 = vsel %vm448, %v369, 0.0
      %666 = vadd.xlane.f32.xlu0 %v665
      %v667 = vpop.xlane.xlu0 %666
      %v668 = vsel %vm438, %v370, 0.0
      %669 = vadd.xlane.f32.xlu0 %v668
      %v670 = vpop.xlane.xlu0 %669
      %v671 = vsel %vm438, %v371, 0.0
      %672 = vadd.xlane.f32.xlu0 %v671
      %v673 = vpop.xlane.xlu0 %672
      %v674 = vsel %vm438, %v372, 0.0
      %675 = vadd.xlane.f32.xlu0 %v674
      %v676 = vpop.xlane.xlu0 %675
      %v677 = vsel %vm448, %v373, 0.0
      %678 = vadd.xlane.f32.xlu0 %v677
      %v679 = vpop.xlane.xlu0 %678
      %v680 = vsel %vm438, %v374, 0.0
      %681 = vadd.xlane.f32.xlu0 %v680
      %v682 = vpop.xlane.xlu0 %681
      %v683 = vsel %vm438, %v375, 0.0
      %684 = vadd.xlane.f32.xlu0 %v683
      %v685 = vpop.xlane.xlu0 %684
      %v686 = vsel %vm438, %v376, 0.0
      %687 = vadd.xlane.f32.xlu0 %v686
      %v688 = vpop.xlane.xlu0 %687
      %v689 = vsel %vm448, %v377, 0.0
      %690 = vadd.xlane.f32.xlu0 %v689
      %v691 = vpop.xlane.xlu0 %690
      %v692 = vsel %vm438, %v378, 0.0
      %693 = vadd.xlane.f32.xlu0 %v692
      %v694 = vpop.xlane.xlu0 %693
      %v695 = vsel %vm438, %v379, 0.0
      %696 = vadd.xlane.f32.xlu0 %v695
      %v697 = vpop.xlane.xlu0 %696
      %v698 = vsel %vm438, %v380, 0.0
      %699 = vadd.xlane.f32.xlu0 %v698
      %v700 = vpop.xlane.xlu0 %699
      %v701 = vsel %vm448, %v381, 0.0
      %702 = vadd.xlane.f32.xlu0 %v701
      %v703 = vpop.xlane.xlu0 %702
      %v704 = vsel %vm438, %v382, 0.0
      %705 = vadd.xlane.f32.xlu0 %v704
      %v706 = vpop.xlane.xlu0 %705
      %v707 = vsel %vm438, %v383, 0.0
      %708 = vadd.xlane.f32.xlu0 %v707
      %v709 = vpop.xlane.xlu0 %708
      %v710 = vsel %vm438, %v384, 0.0
      %711 = vadd.xlane.f32.xlu0 %v710
      %v712 = vpop.xlane.xlu0 %711
      %v713 = vsel %vm448, %v385, 0.0
      %714 = vadd.xlane.f32.xlu0 %v713
      %v715 = vpop.xlane.xlu0 %714
      %v716 = vsel %vm438, %v386, 0.0
      %717 = vadd.xlane.f32.xlu0 %v716
      %v718 = vpop.xlane.xlu0 %717
      %v719 = vsel %vm438, %v387, 0.0
      %720 = vadd.xlane.f32.xlu0 %v719
      %v721 = vpop.xlane.xlu0 %720
      %v722 = vsel %vm438, %v388, 0.0
      %723 = vadd.xlane.f32.xlu0 %v722
      %v724 = vpop.xlane.xlu0 %723
      %v725 = vsel %vm448, %v389, 0.0
      %726 = vadd.xlane.f32.xlu0 %v725
      %v727 = vpop.xlane.xlu0 %726
      %v728 = vsel %vm438, %v390, 0.0
      %729 = vadd.xlane.f32.xlu0 %v728
      %v730 = vpop.xlane.xlu0 %729
      %v731 = vsel %vm438, %v391, 0.0
      %732 = vadd.xlane.f32.xlu0 %v731
      %v733 = vpop.xlane.xlu0 %732
      %v734 = vsel %vm438, %v392, 0.0
      %735 = vadd.xlane.f32.xlu0 %v734
      %v736 = vpop.xlane.xlu0 %735
      %v737 = vsel %vm448, %v393, 0.0
      %738 = vadd.xlane.f32.xlu0 %v737
      %v739 = vpop.xlane.xlu0 %738
      %v740 = vsel %vm438, %v394, 0.0
      %741 = vadd.xlane.f32.xlu0 %v740
      %v742 = vpop.xlane.xlu0 %741
      %v743 = vsel %vm438, %v395, 0.0
      %744 = vadd.xlane.f32.xlu0 %v743
      %v745 = vpop.xlane.xlu0 %744
      %v746 = vsel %vm438, %v396, 0.0
      %747 = vadd.xlane.f32.xlu0 %v746
      %v748 = vpop.xlane.xlu0 %747
      %v749 = vsel %vm448, %v397, 0.0
      %750 = vadd.xlane.f32.xlu0 %v749
      %v751 = vpop.xlane.xlu0 %750
      %v752 = vsel %vm438, %v398, 0.0
      %753 = vadd.xlane.f32.xlu0 %v752
      %v754 = vpop.xlane.xlu0 %753
      %v755 = vsel %vm438, %v399, 0.0
      %756 = vadd.xlane.f32.xlu0 %v755
      %v757 = vpop.xlane.xlu0 %756
      %v758 = vsel %vm438, %v400, 0.0
      %759 = vadd.xlane.f32.xlu0 %v758
      %v760 = vpop.xlane.xlu0 %759
      %v761 = vsel %vm448, %v401, 0.0
      %762 = vadd.xlane.f32.xlu0 %v761
      %v763 = vpop.xlane.xlu0 %762
      %v764 = vsel %vm438, %v402, 0.0
      %765 = vadd.xlane.f32.xlu0 %v764
      %v766 = vpop.xlane.xlu0 %765
      %v767 = vsel %vm438, %v403, 0.0
      %768 = vadd.xlane.f32.xlu0 %v767
      %v769 = vpop.xlane.xlu0 %768
      %v770 = vsel %vm438, %v404, 0.0
      %771 = vadd.xlane.f32.xlu0 %v770
      %v772 = vpop.xlane.xlu0 %771
      %v773 = vsel %vm448, %v405, 0.0
      %774 = vadd.xlane.f32.xlu0 %v773
      %v775 = vpop.xlane.xlu0 %774
      %v776 = vsel %vm438, %v406, 0.0
      %777 = vadd.xlane.f32.xlu0 %v776
      %v778 = vpop.xlane.xlu0 %777
      %v779 = vsel %vm438, %v407, 0.0
      %780 = vadd.xlane.f32.xlu0 %v779
      %v781 = vpop.xlane.xlu0 %780
      %v782 = vsel %vm438, %v408, 0.0
      %783 = vadd.xlane.f32.xlu0 %v782
      %v784 = vpop.xlane.xlu0 %783
      %v785 = vsel %vm448, %v409, 0.0
      %786 = vadd.xlane.f32.xlu0 %v785
      %v787 = vpop.xlane.xlu0 %786
      %v788 = vsel %vm438, %v410, 0.0
      %789 = vadd.xlane.f32.xlu0 %v788
      %v790 = vpop.xlane.xlu0 %789
      %v791 = vsel %vm438, %v411, 0.0
      %792 = vadd.xlane.f32.xlu0 %v791
      %v793 = vpop.xlane.xlu0 %792
      %v794 = vsel %vm438, %v412, 0.0
      %795 = vadd.xlane.f32.xlu0 %v794
      %v796 = vpop.xlane.xlu0 %795
      %v797 = vsel %vm448, %v413, 0.0
      %798 = vadd.xlane.f32.xlu0 %v797
      %v799 = vpop.xlane.xlu0 %798
      %v800 = vsel %vm438, %v414, 0.0
      %801 = vadd.xlane.f32.xlu0 %v800
      %v802 = vpop.xlane.xlu0 %801
      %v803 = vsel %vm438, %v415, 0.0
      %804 = vadd.xlane.f32.xlu0 %v803
      %v805 = vpop.xlane.xlu0 %804
      %v806 = vsel %vm438, %v416, 0.0
      %807 = vadd.xlane.f32.xlu0 %v806
      %v808 = vpop.xlane.xlu0 %807
      %v809 = vsel %vm448, %v417, 0.0
      %810 = vadd.xlane.f32.xlu0 %v809
      %v811 = vpop.xlane.xlu0 %810
      %v812 = vsel %vm438, %v418, 0.0
      %813 = vadd.xlane.f32.xlu0 %v812
      %v814 = vpop.xlane.xlu0 %813
      %v815 = vsel %vm438, %v419, 0.0
      %816 = vadd.xlane.f32.xlu0 %v815
      %v817 = vpop.xlane.xlu0 %816
      %v818 = vsel %vm438, %v420, 0.0
      %819 = vadd.xlane.f32.xlu0 %v818
      %v820 = vpop.xlane.xlu0 %819
      %v821 = vsel %vm448, %v421, 0.0
      %822 = vadd.xlane.f32.xlu0 %v821
      %v823 = vpop.xlane.xlu0 %822
      %v824 = vsel %vm438, %v422, 0.0
      %825 = vadd.xlane.f32.xlu0 %v824
      %v826 = vpop.xlane.xlu0 %825
      %v827 = vsel %vm438, %v423, 0.0
      %828 = vadd.xlane.f32.xlu0 %v827
      %v829 = vpop.xlane.xlu0 %828
      %v830 = vsel %vm438, %v424, 0.0
      %831 = vadd.xlane.f32.xlu0 %v830
      %v832 = vpop.xlane.xlu0 %831
      %v833 = vsel %vm448, %v425, 0.0
      %834 = vadd.xlane.f32.xlu0 %v833
      %v835 = vpop.xlane.xlu0 %834
      %v836 = vsel %vm438, %v426, 0.0
      %837 = vadd.xlane.f32.xlu0 %v836
      %v838 = vpop.xlane.xlu0 %837
      %v839 = vsel %vm438, %v427, 0.0
      %840 = vadd.xlane.f32.xlu0 %v839
      %v841 = vpop.xlane.xlu0 %840
      %v842 = vsel %vm438, %v428, 0.0
      %843 = vadd.xlane.f32.xlu0 %v842
      %v844 = vpop.xlane.xlu0 %843
      %v845 = vsel %vm448, %v429, 0.0
      %846 = vadd.xlane.f32.xlu0 %v845
      %v847 = vpop.xlane.xlu0 %846
      %v848 = vsel %vm438, %v430, 0.0
      %849 = vadd.xlane.f32.xlu0 %v848
      %v850 = vpop.xlane.xlu0 %849
      %v851 = vsel %vm438, %v431, 0.0
      %852 = vadd.xlane.f32.xlu0 %v851
      %v853 = vpop.xlane.xlu0 %852
      %v854 = vsel %vm438, %v432, 0.0
      %855 = vadd.xlane.f32.xlu0 %v854
      %v856 = vpop.xlane.xlu0 %855
      %v857 = vsel %vm448, %v433, 0.0
      %858 = vadd.xlane.f32.xlu0 %v857
      %v859 = vpop.xlane.xlu0 %858
      %v860 = vsel %vm438, %v434, 0.0
      %861 = vadd.xlane.f32.xlu0 %v860
      %v862 = vpop.xlane.xlu0 %861
      %v863 = vsel %vm438, %v435, 0.0
      %864 = vadd.xlane.f32.xlu0 %v863
      %v865 = vpop.xlane.xlu0 %864
      %v866 = vsel %vm438, %v436, 0.0
      %867 = vadd.xlane.f32.xlu0 %v866
      %v868 = vpop.xlane.xlu0 %867
      %v869 = vsel %vm448, %v437, 0.0
      %870 = vadd.xlane.f32.xlu0 %v869
      %v871 = vpop.xlane.xlu0 %870
      %v872 = vmax.f32 %v441, 1e-12
      %v873 = vmax.f32 %v444, 1e-12
      %v874 = vmax.f32 %v447, 1e-12
      %v875 = vmax.f32 %v451, 1e-12
      %v876 = vmax.f32 %v454, 1e-12
      %v877 = vmax.f32 %v457, 1e-12
      %v878 = vmax.f32 %v460, 1e-12
      %v879 = vmax.f32 %v463, 1e-12
      %v880 = vmax.f32 %v466, 1e-12
      %v881 = vmax.f32 %v469, 1e-12
      %v882 = vmax.f32 %v472, 1e-12
      %v883 = vmax.f32 %v475, 1e-12
      %v884 = vmax.f32 %v478, 1e-12
      %v885 = vmax.f32 %v481, 1e-12
      %v886 = vmax.f32 %v484, 1e-12
      %v887 = vmax.f32 %v487, 1e-12
      %v888 = vmax.f32 %v490, 1e-12
      %v889 = vmax.f32 %v493, 1e-12
      %v890 = vmax.f32 %v496, 1e-12
      %v891 = vmax.f32 %v499, 1e-12
      %v892 = vmax.f32 %v502, 1e-12
      %v893 = vmax.f32 %v505, 1e-12
      %v894 = vmax.f32 %v508, 1e-12
      %v895 = vmax.f32 %v511, 1e-12
      %v896 = vmax.f32 %v514, 1e-12
      %v897 = vmax.f32 %v517, 1e-12
      %v898 = vmax.f32 %v520, 1e-12
      %v899 = vmax.f32 %v523, 1e-12
      %v900 = vmax.f32 %v526, 1e-12
      %v901 = vmax.f32 %v529, 1e-12
      %v902 = vmax.f32 %v532, 1e-12
      %v903 = vmax.f32 %v535, 1e-12
      %v904 = vmax.f32 %v538, 1e-12
      %v905 = vmax.f32 %v541, 1e-12
      %v906 = vmax.f32 %v544, 1e-12
      %v907 = vmax.f32 %v547, 1e-12
      %v908 = vmax.f32 %v550, 1e-12
      %v909 = vmax.f32 %v553, 1e-12
      %v910 = vmax.f32 %v556, 1e-12
      %v911 = vmax.f32 %v559, 1e-12
      %v912 = vmax.f32 %v562, 1e-12
      %v913 = vmax.f32 %v565, 1e-12
      %v914 = vmax.f32 %v568, 1e-12
      %v915 = vmax.f32 %v571, 1e-12
      %v916 = vmax.f32 %v574, 1e-12
      %v917 = vmax.f32 %v577, 1e-12
      %v918 = vmax.f32 %v580, 1e-12
      %v919 = vmax.f32 %v583, 1e-12
      %v920 = vmax.f32 %v586, 1e-12
      %v921 = vmax.f32 %v589, 1e-12
      %v922 = vmax.f32 %v592, 1e-12
      %v923 = vmax.f32 %v595, 1e-12
      %v924 = vmax.f32 %v598, 1e-12
      %v925 = vmax.f32 %v601, 1e-12
      %v926 = vmax.f32 %v604, 1e-12
      %v927 = vmax.f32 %v607, 1e-12
      %v928 = vmax.f32 %v610, 1e-12
      %v929 = vmax.f32 %v613, 1e-12
      %v930 = vmax.f32 %v616, 1e-12
      %v931 = vmax.f32 %v619, 1e-12
      %v932 = vmax.f32 %v622, 1e-12
      %v933 = vmax.f32 %v625, 1e-12
      %v934 = vmax.f32 %v628, 1e-12
      %v935 = vmax.f32 %v631, 1e-12
      %v936 = vmax.f32 %v634, 1e-12
      %v937 = vmax.f32 %v637, 1e-12
      %v938 = vmax.f32 %v640, 1e-12
      %v939 = vmax.f32 %v643, 1e-12
      %v940 = vmax.f32 %v646, 1e-12
      %v941 = vmax.f32 %v649, 1e-12
      %v942 = vmax.f32 %v652, 1e-12
      %v943 = vmax.f32 %v655, 1e-12
      %v944 = vmax.f32 %v658, 1e-12
      %v945 = vmax.f32 %v661, 1e-12
      %v946 = vmax.f32 %v664, 1e-12
      %v947 = vmax.f32 %v667, 1e-12
      %v948 = vmax.f32 %v670, 1e-12
      %v949 = vmax.f32 %v673, 1e-12
      %v950 = vmax.f32 %v676, 1e-12
      %v951 = vmax.f32 %v679, 1e-12
      %v952 = vmax.f32 %v682, 1e-12
      %v953 = vmax.f32 %v685, 1e-12
      %v954 = vmax.f32 %v688, 1e-12
      %v955 = vmax.f32 %v691, 1e-12
      %v956 = vmax.f32 %v694, 1e-12
      %v957 = vmax.f32 %v697, 1e-12
      %v958 = vmax.f32 %v700, 1e-12
      %v959 = vmax.f32 %v703, 1e-12
      %v960 = vmax.f32 %v706, 1e-12
      %v961 = vmax.f32 %v709, 1e-12
      %v962 = vmax.f32 %v712, 1e-12
      %v963 = vmax.f32 %v715, 1e-12
      %v964 = vmax.f32 %v718, 1e-12
      %v965 = vmax.f32 %v721, 1e-12
      %v966 = vmax.f32 %v724, 1e-12
      %v967 = vmax.f32 %v727, 1e-12
      %v968 = vmax.f32 %v730, 1e-12
      %v969 = vmax.f32 %v733, 1e-12
      %v970 = vmax.f32 %v736, 1e-12
      %v971 = vmax.f32 %v739, 1e-12
      %v972 = vmax.f32 %v742, 1e-12
      %v973 = vmax.f32 %v745, 1e-12
      %v974 = vmax.f32 %v748, 1e-12
      %v975 = vmax.f32 %v751, 1e-12
      %v976 = vmax.f32 %v754, 1e-12
      %v977 = vmax.f32 %v757, 1e-12
      %v978 = vmax.f32 %v760, 1e-12
      %v979 = vmax.f32 %v763, 1e-12
      %v980 = vmax.f32 %v766, 1e-12
      %v981 = vmax.f32 %v769, 1e-12
      %v982 = vmax.f32 %v772, 1e-12
      %v983 = vmax.f32 %v775, 1e-12
      %v984 = vmax.f32 %v778, 1e-12
      %v985 = vmax.f32 %v781, 1e-12
      %v986 = vmax.f32 %v784, 1e-12
      %v987 = vmax.f32 %v787, 1e-12
      %v988 = vmax.f32 %v790, 1e-12
      %v989 = vmax.f32 %v793, 1e-12
      %v990 = vmax.f32 %v796, 1e-12
      %v991 = vmax.f32 %v799, 1e-12
      %v992 = vmax.f32 %v802, 1e-12
      %v993 = vmax.f32 %v805, 1e-12
      %v994 = vmax.f32 %v808, 1e-12
      %v995 = vmax.f32 %v811, 1e-12
      %v996 = vmax.f32 %v814, 1e-12
      %v997 = vmax.f32 %v817, 1e-12
      %v998 = vmax.f32 %v820, 1e-12
      %v999 = vmax.f32 %v823, 1e-12
      %v1000 = vmax.f32 %v826, 1e-12
      %v1001 = vmax.f32 %v829, 1e-12
      %v1002 = vmax.f32 %v832, 1e-12
      %v1003 = vmax.f32 %v835, 1e-12
      %v1004 = vmax.f32 %v838, 1e-12
      %v1005 = vmax.f32 %v841, 1e-12
      %v1006 = vmax.f32 %v844, 1e-12
      %v1007 = vmax.f32 %v847, 1e-12
      %v1008 = vmax.f32 %v850, 1e-12
      %v1009 = vmax.f32 %v853, 1e-12
      %v1010 = vmax.f32 %v856, 1e-12
      %v1011 = vmax.f32 %v859, 1e-12
      %v1012 = vmax.f32 %v862, 1e-12
      %v1013 = vmax.f32 %v865, 1e-12
      %v1014 = vmax.f32 %v868, 1e-12
      %v1015 = vmax.f32 %v871, 1e-12
      %v1016 = vrsqrt.pop %v872
      %v1017 = vrsqrt.pop %v873
      %v1018 = vrsqrt.pop %v874
      %v1019 = vrsqrt.pop %v875
      %v1020 = vrsqrt.pop %v876
      %v1021 = vrsqrt.pop %v877
      %v1022 = vrsqrt.pop %v878
      %v1023 = vrsqrt.pop %v879
      %v1024 = vrsqrt.pop %v880
      %v1025 = vrsqrt.pop %v881
      %v1026 = vrsqrt.pop %v882
      %v1027 = vrsqrt.pop %v883
      %v1028 = vrsqrt.pop %v884
      %v1029 = vrsqrt.pop %v885
      %v1030 = vrsqrt.pop %v886
      %v1031 = vrsqrt.pop %v887
      %v1032 = vrsqrt.pop %v888
      %v1033 = vrsqrt.pop %v889
      %v1034 = vrsqrt.pop %v890
      %v1035 = vrsqrt.pop %v891
      %v1036 = vrsqrt.pop %v892
      %v1037 = vrsqrt.pop %v893
      %v1038 = vrsqrt.pop %v894
      %v1039 = vrsqrt.pop %v895
      %v1040 = vrsqrt.pop %v896
      %v1041 = vrsqrt.pop %v897
      %v1042 = vrsqrt.pop %v898
      %v1043 = vrsqrt.pop %v899
      %v1044 = vrsqrt.pop %v900
      %v1045 = vrsqrt.pop %v901
      %v1046 = vrsqrt.pop %v902
      %v1047 = vrsqrt.pop %v903
      %v1048 = vrsqrt.pop %v904
      %v1049 = vrsqrt.pop %v905
      %v1050 = vrsqrt.pop %v906
      %v1051 = vrsqrt.pop %v907
      %v1052 = vrsqrt.pop %v908
      %v1053 = vrsqrt.pop %v909
      %v1054 = vrsqrt.pop %v910
      %v1055 = vrsqrt.pop %v911
      %v1056 = vrsqrt.pop %v912
      %v1057 = vrsqrt.pop %v913
      %v1058 = vrsqrt.pop %v914
      %v1059 = vrsqrt.pop %v915
      %v1060 = vrsqrt.pop %v916
      %v1061 = vrsqrt.pop %v917
      %v1062 = vrsqrt.pop %v918
      %v1063 = vrsqrt.pop %v919
      %v1064 = vrsqrt.pop %v920
      %v1065 = vrsqrt.pop %v921
      %v1066 = vrsqrt.pop %v922
      %v1067 = vrsqrt.pop %v923
      %v1068 = vrsqrt.pop %v924
      %v1069 = vrsqrt.pop %v925
      %v1070 = vrsqrt.pop %v926
      %v1071 = vrsqrt.pop %v927
      %v1072 = vrsqrt.pop %v928
      %v1073 = vrsqrt.pop %v929
      %v1074 = vrsqrt.pop %v930
      %v1075 = vrsqrt.pop %v931
      %v1076 = vrsqrt.pop %v932
      %v1077 = vrsqrt.pop %v933
      %v1078 = vrsqrt.pop %v934
      %v1079 = vrsqrt.pop %v935
      %v1080 = vrsqrt.pop %v936
      %v1081 = vrsqrt.pop %v937
      %v1082 = vrsqrt.pop %v938
      %v1083 = vrsqrt.pop %v939
      %v1084 = vrsqrt.pop %v940
      %v1085 = vrsqrt.pop %v941
      %v1086 = vrsqrt.pop %v942
      %v1087 = vrsqrt.pop %v943
      %v1088 = vrsqrt.pop %v944
      %v1089 = vrsqrt.pop %v945
      %v1090 = vrsqrt.pop %v946
      %v1091 = vrsqrt.pop %v947
      %v1092 = vrsqrt.pop %v948
      %v1093 = vrsqrt.pop %v949
      %v1094 = vrsqrt.pop %v950
      %v1095 = vrsqrt.pop %v951
      %v1096 = vrsqrt.pop %v952
      %v1097 = vrsqrt.pop %v953
      %v1098 = vrsqrt.pop %v954
      %v1099 = vrsqrt.pop %v955
      %v1100 = vrsqrt.pop %v956
      %v1101 = vrsqrt.pop %v957
      %v1102 = vrsqrt.pop %v958
      %v1103 = vrsqrt.pop %v959
      %v1104 = vrsqrt.pop %v960
      %v1105 = vrsqrt.pop %v961
      %v1106 = vrsqrt.pop %v962
      %v1107 = vrsqrt.pop %v963
      %v1108 = vrsqrt.pop %v964
      %v1109 = vrsqrt.pop %v965
      %v1110 = vrsqrt.pop %v966
      %v1111 = vrsqrt.pop %v967
      %v1112 = vrsqrt.pop %v968
      %v1113 = vrsqrt.pop %v969
      %v1114 = vrsqrt.pop %v970
      %v1115 = vrsqrt.pop %v971
      %v1116 = vrsqrt.pop %v972
      %v1117 = vrsqrt.pop %v973
      %v1118 = vrsqrt.pop %v974
      %v1119 = vrsqrt.pop %v975
      %v1120 = vrsqrt.pop %v976
      %v1121 = vrsqrt.pop %v977
      %v1122 = vrsqrt.pop %v978
      %v1123 = vrsqrt.pop %v979
      %v1124 = vrsqrt.pop %v980
      %v1125 = vrsqrt.pop %v981
      %v1126 = vrsqrt.pop %v982
      %v1127 = vrsqrt.pop %v983
      %v1128 = vrsqrt.pop %v984
      %v1129 = vrsqrt.pop %v985
      %v1130 = vrsqrt.pop %v986
      %v1131 = vrsqrt.pop %v987
      %v1132 = vrsqrt.pop %v988
      %v1133 = vrsqrt.pop %v989
      %v1134 = vrsqrt.pop %v990
      %v1135 = vrsqrt.pop %v991
      %v1136 = vrsqrt.pop %v992
      %v1137 = vrsqrt.pop %v993
      %v1138 = vrsqrt.pop %v994
      %v1139 = vrsqrt.pop %v995
      %v1140 = vrsqrt.pop %v996
      %v1141 = vrsqrt.pop %v997
      %v1142 = vrsqrt.pop %v998
      %v1143 = vrsqrt.pop %v999
      %v1144 = vrsqrt.pop %v1000
      %v1145 = vrsqrt.pop %v1001
      %v1146 = vrsqrt.pop %v1002
      %v1147 = vrsqrt.pop %v1003
      %v1148 = vrsqrt.pop %v1004
      %v1149 = vrsqrt.pop %v1005
      %v1150 = vrsqrt.pop %v1006
      %v1151 = vrsqrt.pop %v1007
      %v1152 = vrsqrt.pop %v1008
      %v1153 = vrsqrt.pop %v1009
      %v1154 = vrsqrt.pop %v1010
      %v1155 = vrsqrt.pop %v1011
      %v1156 = vrsqrt.pop %v1012
      %v1157 = vrsqrt.pop %v1013
      %v1158 = vrsqrt.pop %v1014
      %v1159 = vrsqrt.pop %v1015
      %v1160 = vmul.f32 %v150, %v1016
      %v1161 = vmul.f32 %v151, %v1017
      %v1162 = vmul.f32 %v152, %v1018
      %v1163 = vmul.f32 %v153, %v1019
      %v1164 = vmul.f32 %v154, %v1020
      %v1165 = vmul.f32 %v155, %v1021
      %v1166 = vmul.f32 %v156, %v1022
      %v1167 = vmul.f32 %v157, %v1023
      %v1168 = vmul.f32 %v158, %v1024
      %v1169 = vmul.f32 %v159, %v1025
      %v1170 = vmul.f32 %v160, %v1026
      %v1171 = vmul.f32 %v161, %v1027
      %v1172 = vmul.f32 %v162, %v1028
      %v1173 = vmul.f32 %v163, %v1029
      %v1174 = vmul.f32 %v164, %v1030
      %v1175 = vmul.f32 %v165, %v1031
      %v1176 = vmul.f32 %v166, %v1032
      %v1177 = vmul.f32 %v167, %v1033
      %v1178 = vmul.f32 %v168, %v1034
      %v1179 = vmul.f32 %v169, %v1035
      %v1180 = vmul.f32 %v170, %v1036
      %v1181 = vmul.f32 %v171, %v1037
      %v1182 = vmul.f32 %v172, %v1038
      %v1183 = vmul.f32 %v173, %v1039
      %v1184 = vmul.f32 %v174, %v1040
      %v1185 = vmul.f32 %v175, %v1041
      %v1186 = vmul.f32 %v176, %v1042
      %v1187 = vmul.f32 %v177, %v1043
      %v1188 = vmul.f32 %v178, %v1044
      %v1189 = vmul.f32 %v179, %v1045
      %v1190 = vmul.f32 %v180, %v1046
      %v1191 = vmul.f32 %v181, %v1047
      %v1192 = vmul.f32 %v182, %v1048
      %v1193 = vmul.f32 %v183, %v1049
      %v1194 = vmul.f32 %v184, %v1050
      %v1195 = vmul.f32 %v185, %v1051
      %v1196 = vmul.f32 %v186, %v1052
      %v1197 = vmul.f32 %v187, %v1053
      %v1198 = vmul.f32 %v188, %v1054
      %v1199 = vmul.f32 %v189, %v1055
      %v1200 = vmul.f32 %v190, %v1056
      %v1201 = vmul.f32 %v191, %v1057
      %v1202 = vmul.f32 %v192, %v1058
      %v1203 = vmul.f32 %v193, %v1059
      %v1204 = vmul.f32 %v194, %v1060
      %v1205 = vmul.f32 %v195, %v1061
      %v1206 = vmul.f32 %v196, %v1062
      %v1207 = vmul.f32 %v197, %v1063
      %v1208 = vmul.f32 %v198, %v1064
      %v1209 = vmul.f32 %v199, %v1065
      %v1210 = vmul.f32 %v200, %v1066
      %v1211 = vmul.f32 %v201, %v1067
      %v1212 = vmul.f32 %v202, %v1068
      %v1213 = vmul.f32 %v203, %v1069
      %v1214 = vmul.f32 %v204, %v1070
      %v1215 = vmul.f32 %v205, %v1071
      %v1216 = vmul.f32 %v206, %v1072
      %v1217 = vmul.f32 %v207, %v1073
      %v1218 = vmul.f32 %v208, %v1074
      %v1219 = vmul.f32 %v209, %v1075
      %v1220 = vmul.f32 %v210, %v1076
      %v1221 = vmul.f32 %v211, %v1077
      %v1222 = vmul.f32 %v212, %v1078
      %v1223 = vmul.f32 %v213, %v1079
      %v1224 = vmul.f32 %v214, %v1080
      %v1225 = vmul.f32 %v215, %v1081
      %v1226 = vmul.f32 %v216, %v1082
      %v1227 = vmul.f32 %v217, %v1083
      %v1228 = vmul.f32 %v218, %v1084
      %v1229 = vmul.f32 %v219, %v1085
      %v1230 = vmul.f32 %v220, %v1086
      %v1231 = vmul.f32 %v221, %v1087
      %v1232 = vmul.f32 %v222, %v1088
      %v1233 = vmul.f32 %v223, %v1089
      %v1234 = vmul.f32 %v224, %v1090
      %v1235 = vmul.f32 %v225, %v1091
      %v1236 = vmul.f32 %v226, %v1092
      %v1237 = vmul.f32 %v227, %v1093
      %v1238 = vmul.f32 %v228, %v1094
      %v1239 = vmul.f32 %v229, %v1095
      %v1240 = vmul.f32 %v230, %v1096
      %v1241 = vmul.f32 %v231, %v1097
      %v1242 = vmul.f32 %v232, %v1098
      %v1243 = vmul.f32 %v233, %v1099
      %v1244 = vmul.f32 %v234, %v1100
      %v1245 = vmul.f32 %v235, %v1101
      %v1246 = vmul.f32 %v236, %v1102
      %v1247 = vmul.f32 %v237, %v1103
      %v1248 = vmul.f32 %v238, %v1104
      %v1249 = vmul.f32 %v239, %v1105
      %v1250 = vmul.f32 %v240, %v1106
      %v1251 = vmul.f32 %v241, %v1107
      %v1252 = vmul.f32 %v242, %v1108
      %v1253 = vmul.f32 %v243, %v1109
      %v1254 = vmul.f32 %v244, %v1110
      %v1255 = vmul.f32 %v245, %v1111
      %v1256 = vmul.f32 %v246, %v1112
      %v1257 = vmul.f32 %v247, %v1113
      %v1258 = vmul.f32 %v248, %v1114
      %v1259 = vmul.f32 %v249, %v1115
      %v1260 = vmul.f32 %v250, %v1116
      %v1261 = vmul.f32 %v251, %v1117
      %v1262 = vmul.f32 %v252, %v1118
      %v1263 = vmul.f32 %v253, %v1119
      %v1264 = vmul.f32 %v254, %v1120
      %v1265 = vmul.f32 %v255, %v1121
      %v1266 = vmul.f32 %v256, %v1122
      %v1267 = vmul.f32 %v257, %v1123
      %v1268 = vmul.f32 %v258, %v1124
      %v1269 = vmul.f32 %v259, %v1125
      %v1270 = vmul.f32 %v260, %v1126
      %v1271 = vmul.f32 %v261, %v1127
      %v1272 = vmul.f32 %v262, %v1128
      %v1273 = vmul.f32 %v263, %v1129
      %v1274 = vmul.f32 %v264, %v1130
      %v1275 = vmul.f32 %v265, %v1131
      %v1276 = vmul.f32 %v266, %v1132
      %v1277 = vmul.f32 %v267, %v1133
      %v1278 = vmul.f32 %v268, %v1134
      %v1279 = vmul.f32 %v269, %v1135
      %v1280 = vmul.f32 %v270, %v1136
      %v1281 = vmul.f32 %v271, %v1137
      %v1282 = vmul.f32 %v272, %v1138
      %v1283 = vmul.f32 %v273, %v1139
      %v1284 = vmul.f32 %v274, %v1140
      %v1285 = vmul.f32 %v275, %v1141
      %v1286 = vmul.f32 %v276, %v1142
      %v1287 = vmul.f32 %v277, %v1143
      %v1288 = vmul.f32 %v278, %v1144
      %v1289 = vmul.f32 %v279, %v1145
      %v1290 = vmul.f32 %v280, %v1146
      %v1291 = vmul.f32 %v281, %v1147
      %v1292 = vmul.f32 %v282, %v1148
      %v1293 = vmul.f32 %v283, %v1149
      %v1294 = vmul.f32 %v284, %v1150
      %v1295 = vmul.f32 %v285, %v1151
      %v1296 = vmul.f32 %v286, %v1152
      %v1297 = vmul.f32 %v287, %v1153
      %v1298 = vmul.f32 %v288, %v1154
      %v1299 = vmul.f32 %v289, %v1155
      %v1300 = vmul.f32 %v290, %v1156
      %v1301 = vmul.f32 %v291, %v1157
      %v1302 = vmul.f32 %v292, %v1158
      %v1303 = vmul.f32 %v293, %v1159
      %v1304 = vsel %vm438, %v1160, 0.0
      %v1305 = vsel %vm438, %v1161, 0.0
      %v1306 = vadd.f32 %v1304, %v1305
      %v1307 = vsel %vm438, %v1162, 0.0
      %v1308 = vadd.f32 %v1306, %v1307
      %v1309 = vsel %vm448, %v1163, 0.0
      %v1310 = vadd.f32 %v1308, %v1309
      %v1311 = vrot.slane %v1310, 4
      %v1312 = vadd.f32 %v1310, %v1311
      %v1313 = vrot.slane %v1312, 2
      %v1314 = vadd.f32 %v1312, %v1313
      %v1315 = vrot.slane %v1314, 1
      %v1316 = vadd.f32 %v1314, %v1315
      %v1317 = vsel %vm438, %v1164, 0.0
      %v1318 = vsel %vm438, %v1165, 0.0
      %v1319 = vadd.f32 %v1317, %v1318
      %v1320 = vsel %vm438, %v1166, 0.0
      %v1321 = vadd.f32 %v1319, %v1320
      %v1322 = vsel %vm448, %v1167, 0.0
      %v1323 = vadd.f32 %v1321, %v1322
      %v1324 = vrot.slane %v1323, 4
      %v1325 = vadd.f32 %v1323, %v1324
      %v1326 = vrot.slane %v1325, 2
      %v1327 = vadd.f32 %v1325, %v1326
      %v1328 = vrot.slane %v1327, 1
      %v1329 = vadd.f32 %v1327, %v1328
      %v1330 = vsel %vm438, %v1168, 0.0
      %v1331 = vsel %vm438, %v1169, 0.0
      %v1332 = vadd.f32 %v1330, %v1331
      %v1333 = vsel %vm438, %v1170, 0.0
      %v1334 = vadd.f32 %v1332, %v1333
      %v1335 = vsel %vm448, %v1171, 0.0
      %v1336 = vadd.f32 %v1334, %v1335
      %v1337 = vrot.slane %v1336, 4
      %v1338 = vadd.f32 %v1336, %v1337
      %v1339 = vrot.slane %v1338, 2
      %v1340 = vadd.f32 %v1338, %v1339
      %v1341 = vrot.slane %v1340, 1
      %v1342 = vadd.f32 %v1340, %v1341
      %v1343 = vsel %vm438, %v1172, 0.0
      %v1344 = vsel %vm438, %v1173, 0.0
      %v1345 = vadd.f32 %v1343, %v1344
      %v1346 = vsel %vm438, %v1174, 0.0
      %v1347 = vadd.f32 %v1345, %v1346
      %v1348 = vsel %vm448, %v1175, 0.0
      %v1349 = vadd.f32 %v1347, %v1348
      %v1350 = vrot.slane %v1349, 4
      %v1351 = vadd.f32 %v1349, %v1350
      %v1352 = vrot.slane %v1351, 2
      %v1353 = vadd.f32 %v1351, %v1352
      %v1354 = vrot.slane %v1353, 1
      %v1355 = vadd.f32 %v1353, %v1354
      %v1356 = vsel %vm438, %v1176, 0.0
      %v1357 = vsel %vm438, %v1177, 0.0
      %v1358 = vadd.f32 %v1356, %v1357
      %v1359 = vsel %vm438, %v1178, 0.0
      %v1360 = vadd.f32 %v1358, %v1359
      %v1361 = vsel %vm448, %v1179, 0.0
      %v1362 = vadd.f32 %v1360, %v1361
      %v1363 = vrot.slane %v1362, 4
      %v1364 = vadd.f32 %v1362, %v1363
      %v1365 = vrot.slane %v1364, 2
      %v1366 = vadd.f32 %v1364, %v1365
      %v1367 = vrot.slane %v1366, 1
      %v1368 = vadd.f32 %v1366, %v1367
      %v1369 = vsel %vm438, %v1180, 0.0
      %v1370 = vsel %vm438, %v1181, 0.0
      %v1371 = vadd.f32 %v1369, %v1370
      %v1372 = vsel %vm438, %v1182, 0.0
      %v1373 = vadd.f32 %v1371, %v1372
      %v1374 = vsel %vm448, %v1183, 0.0
      %v1375 = vadd.f32 %v1373, %v1374
      %v1376 = vrot.slane %v1375, 4
      %v1377 = vadd.f32 %v1375, %v1376
      %v1378 = vrot.slane %v1377, 2
      %v1379 = vadd.f32 %v1377, %v1378
      %v1380 = vrot.slane %v1379, 1
      %v1381 = vadd.f32 %v1379, %v1380
      %v1382 = vsel %vm438, %v1184, 0.0
      %v1383 = vsel %vm438, %v1185, 0.0
      %v1384 = vadd.f32 %v1382, %v1383
      %v1385 = vsel %vm438, %v1186, 0.0
      %v1386 = vadd.f32 %v1384, %v1385
      %v1387 = vsel %vm448, %v1187, 0.0
      %v1388 = vadd.f32 %v1386, %v1387
      %v1389 = vrot.slane %v1388, 4
      %v1390 = vadd.f32 %v1388, %v1389
      %v1391 = vrot.slane %v1390, 2
      %v1392 = vadd.f32 %v1390, %v1391
      %v1393 = vrot.slane %v1392, 1
      %v1394 = vadd.f32 %v1392, %v1393
      %v1395 = vsel %vm438, %v1188, 0.0
      %v1396 = vsel %vm438, %v1189, 0.0
      %v1397 = vadd.f32 %v1395, %v1396
      %v1398 = vsel %vm438, %v1190, 0.0
      %v1399 = vadd.f32 %v1397, %v1398
      %v1400 = vsel %vm448, %v1191, 0.0
      %v1401 = vadd.f32 %v1399, %v1400
      %v1402 = vrot.slane %v1401, 4
      %v1403 = vadd.f32 %v1401, %v1402
      %v1404 = vrot.slane %v1403, 2
      %v1405 = vadd.f32 %v1403, %v1404
      %v1406 = vrot.slane %v1405, 1
      %v1407 = vadd.f32 %v1405, %v1406
      %v1408 = vsel %vm438, %v1192, 0.0
      %v1409 = vsel %vm438, %v1193, 0.0
      %v1410 = vadd.f32 %v1408, %v1409
      %v1411 = vsel %vm438, %v1194, 0.0
      %v1412 = vadd.f32 %v1410, %v1411
      %v1413 = vsel %vm448, %v1195, 0.0
      %v1414 = vadd.f32 %v1412, %v1413
      %v1415 = vrot.slane %v1414, 4
      %v1416 = vadd.f32 %v1414, %v1415
      %v1417 = vrot.slane %v1416, 2
      %v1418 = vadd.f32 %v1416, %v1417
      %v1419 = vrot.slane %v1418, 1
      %v1420 = vadd.f32 %v1418, %v1419
      %v1421 = vsel %vm438, %v1196, 0.0
      %v1422 = vsel %vm438, %v1197, 0.0
      %v1423 = vadd.f32 %v1421, %v1422
      %v1424 = vsel %vm438, %v1198, 0.0
      %v1425 = vadd.f32 %v1423, %v1424
      %v1426 = vsel %vm448, %v1199, 0.0
      %v1427 = vadd.f32 %v1425, %v1426
      %v1428 = vrot.slane %v1427, 4
      %v1429 = vadd.f32 %v1427, %v1428
      %v1430 = vrot.slane %v1429, 2
      %v1431 = vadd.f32 %v1429, %v1430
      %v1432 = vrot.slane %v1431, 1
      %v1433 = vadd.f32 %v1431, %v1432
      %v1434 = vsel %vm438, %v1200, 0.0
      %v1435 = vsel %vm438, %v1201, 0.0
      %v1436 = vadd.f32 %v1434, %v1435
      %v1437 = vsel %vm438, %v1202, 0.0
      %v1438 = vadd.f32 %v1436, %v1437
      %v1439 = vsel %vm448, %v1203, 0.0
      %v1440 = vadd.f32 %v1438, %v1439
      %v1441 = vrot.slane %v1440, 4
      %v1442 = vadd.f32 %v1440, %v1441
      %v1443 = vrot.slane %v1442, 2
      %v1444 = vadd.f32 %v1442, %v1443
      %v1445 = vrot.slane %v1444, 1
      %v1446 = vadd.f32 %v1444, %v1445
      %v1447 = vsel %vm438, %v1204, 0.0
      %v1448 = vsel %vm438, %v1205, 0.0
      %v1449 = vadd.f32 %v1447, %v1448
      %v1450 = vsel %vm438, %v1206, 0.0
      %v1451 = vadd.f32 %v1449, %v1450
      %v1452 = vsel %vm448, %v1207, 0.0
      %v1453 = vadd.f32 %v1451, %v1452
      %v1454 = vrot.slane %v1453, 4
      %v1455 = vadd.f32 %v1453, %v1454
      %v1456 = vrot.slane %v1455, 2
      %v1457 = vadd.f32 %v1455, %v1456
      %v1458 = vrot.slane %v1457, 1
      %v1459 = vadd.f32 %v1457, %v1458
      %v1460 = vsel %vm438, %v1208, 0.0
      %v1461 = vsel %vm438, %v1209, 0.0
      %v1462 = vadd.f32 %v1460, %v1461
      %v1463 = vsel %vm438, %v1210, 0.0
      %v1464 = vadd.f32 %v1462, %v1463
      %v1465 = vsel %vm448, %v1211, 0.0
      %v1466 = vadd.f32 %v1464, %v1465
      %v1467 = vrot.slane %v1466, 4
      %v1468 = vadd.f32 %v1466, %v1467
      %v1469 = vrot.slane %v1468, 2
      %v1470 = vadd.f32 %v1468, %v1469
      %v1471 = vrot.slane %v1470, 1
      %v1472 = vadd.f32 %v1470, %v1471
      %v1473 = vsel %vm438, %v1212, 0.0
      %v1474 = vsel %vm438, %v1213, 0.0
      %v1475 = vadd.f32 %v1473, %v1474
      %v1476 = vsel %vm438, %v1214, 0.0
      %v1477 = vadd.f32 %v1475, %v1476
      %v1478 = vsel %vm448, %v1215, 0.0
      %v1479 = vadd.f32 %v1477, %v1478
      %v1480 = vrot.slane %v1479, 4
      %v1481 = vadd.f32 %v1479, %v1480
      %v1482 = vrot.slane %v1481, 2
      %v1483 = vadd.f32 %v1481, %v1482
      %v1484 = vrot.slane %v1483, 1
      %v1485 = vadd.f32 %v1483, %v1484
      %v1486 = vsel %vm438, %v1216, 0.0
      %v1487 = vsel %vm438, %v1217, 0.0
      %v1488 = vadd.f32 %v1486, %v1487
      %v1489 = vsel %vm438, %v1218, 0.0
      %v1490 = vadd.f32 %v1488, %v1489
      %v1491 = vsel %vm448, %v1219, 0.0
      %v1492 = vadd.f32 %v1490, %v1491
      %v1493 = vrot.slane %v1492, 4
      %v1494 = vadd.f32 %v1492, %v1493
      %v1495 = vrot.slane %v1494, 2
      %v1496 = vadd.f32 %v1494, %v1495
      %v1497 = vrot.slane %v1496, 1
      %v1498 = vadd.f32 %v1496, %v1497
      %v1499 = vsel %vm438, %v1220, 0.0
      %v1500 = vsel %vm438, %v1221, 0.0
      %v1501 = vadd.f32 %v1499, %v1500
      %v1502 = vsel %vm438, %v1222, 0.0
      %v1503 = vadd.f32 %v1501, %v1502
      %v1504 = vsel %vm448, %v1223, 0.0
      %v1505 = vadd.f32 %v1503, %v1504
      %v1506 = vrot.slane %v1505, 4
      %v1507 = vadd.f32 %v1505, %v1506
      %v1508 = vrot.slane %v1507, 2
      %v1509 = vadd.f32 %v1507, %v1508
      %v1510 = vrot.slane %v1509, 1
      %v1511 = vadd.f32 %v1509, %v1510
      %v1512 = vsel %vm438, %v1224, 0.0
      %v1513 = vsel %vm438, %v1225, 0.0
      %v1514 = vadd.f32 %v1512, %v1513
      %v1515 = vsel %vm438, %v1226, 0.0
      %v1516 = vadd.f32 %v1514, %v1515
      %v1517 = vsel %vm448, %v1227, 0.0
      %v1518 = vadd.f32 %v1516, %v1517
      %v1519 = vrot.slane %v1518, 4
      %v1520 = vadd.f32 %v1518, %v1519
      %v1521 = vrot.slane %v1520, 2
      %v1522 = vadd.f32 %v1520, %v1521
      %v1523 = vrot.slane %v1522, 1
      %v1524 = vadd.f32 %v1522, %v1523
      %v1525 = vsel %vm438, %v1228, 0.0
      %v1526 = vsel %vm438, %v1229, 0.0
      %v1527 = vadd.f32 %v1525, %v1526
      %v1528 = vsel %vm438, %v1230, 0.0
      %v1529 = vadd.f32 %v1527, %v1528
      %v1530 = vsel %vm448, %v1231, 0.0
      %v1531 = vadd.f32 %v1529, %v1530
      %v1532 = vrot.slane %v1531, 4
      %v1533 = vadd.f32 %v1531, %v1532
      %v1534 = vrot.slane %v1533, 2
      %v1535 = vadd.f32 %v1533, %v1534
      %v1536 = vrot.slane %v1535, 1
      %v1537 = vadd.f32 %v1535, %v1536
      %v1538 = vsel %vm438, %v1232, 0.0
      %v1539 = vsel %vm438, %v1233, 0.0
      %v1540 = vadd.f32 %v1538, %v1539
      %v1541 = vsel %vm438, %v1234, 0.0
      %v1542 = vadd.f32 %v1540, %v1541
      %v1543 = vsel %vm448, %v1235, 0.0
      %v1544 = vadd.f32 %v1542, %v1543
      %v1545 = vrot.slane %v1544, 4
      %v1546 = vadd.f32 %v1544, %v1545
      %v1547 = vrot.slane %v1546, 2
      %v1548 = vadd.f32 %v1546, %v1547
      %v1549 = vrot.slane %v1548, 1
      %v1550 = vadd.f32 %v1548, %v1549
      %v1551 = vsel %vm438, %v1236, 0.0
      %v1552 = vsel %vm438, %v1237, 0.0
      %v1553 = vadd.f32 %v1551, %v1552
      %v1554 = vsel %vm438, %v1238, 0.0
      %v1555 = vadd.f32 %v1553, %v1554
      %v1556 = vsel %vm448, %v1239, 0.0
      %v1557 = vadd.f32 %v1555, %v1556
      %v1558 = vrot.slane %v1557, 4
      %v1559 = vadd.f32 %v1557, %v1558
      %v1560 = vrot.slane %v1559, 2
      %v1561 = vadd.f32 %v1559, %v1560
      %v1562 = vrot.slane %v1561, 1
      %v1563 = vadd.f32 %v1561, %v1562
      %v1564 = vsel %vm438, %v1240, 0.0
      %v1565 = vsel %vm438, %v1241, 0.0
      %v1566 = vadd.f32 %v1564, %v1565
      %v1567 = vsel %vm438, %v1242, 0.0
      %v1568 = vadd.f32 %v1566, %v1567
      %v1569 = vsel %vm448, %v1243, 0.0
      %v1570 = vadd.f32 %v1568, %v1569
      %v1571 = vrot.slane %v1570, 4
      %v1572 = vadd.f32 %v1570, %v1571
      %v1573 = vrot.slane %v1572, 2
      %v1574 = vadd.f32 %v1572, %v1573
      %v1575 = vrot.slane %v1574, 1
      %v1576 = vadd.f32 %v1574, %v1575
      %v1577 = vsel %vm438, %v1244, 0.0
      %v1578 = vsel %vm438, %v1245, 0.0
      %v1579 = vadd.f32 %v1577, %v1578
      %v1580 = vsel %vm438, %v1246, 0.0
      %v1581 = vadd.f32 %v1579, %v1580
      %v1582 = vsel %vm448, %v1247, 0.0
      %v1583 = vadd.f32 %v1581, %v1582
      %v1584 = vrot.slane %v1583, 4
      %v1585 = vadd.f32 %v1583, %v1584
      %v1586 = vrot.slane %v1585, 2
      %v1587 = vadd.f32 %v1585, %v1586
      %v1588 = vrot.slane %v1587, 1
      %v1589 = vadd.f32 %v1587, %v1588
      %v1590 = vsel %vm438, %v1248, 0.0
      %v1591 = vsel %vm438, %v1249, 0.0
      %v1592 = vadd.f32 %v1590, %v1591
      %v1593 = vsel %vm438, %v1250, 0.0
      %v1594 = vadd.f32 %v1592, %v1593
      %v1595 = vsel %vm448, %v1251, 0.0
      %v1596 = vadd.f32 %v1594, %v1595
      %v1597 = vrot.slane %v1596, 4
      %v1598 = vadd.f32 %v1596, %v1597
      %v1599 = vrot.slane %v1598, 2
      %v1600 = vadd.f32 %v1598, %v1599
      %v1601 = vrot.slane %v1600, 1
      %v1602 = vadd.f32 %v1600, %v1601
      %v1603 = vsel %vm438, %v1252, 0.0
      %v1604 = vsel %vm438, %v1253, 0.0
      %v1605 = vadd.f32 %v1603, %v1604
      %v1606 = vsel %vm438, %v1254, 0.0
      %v1607 = vadd.f32 %v1605, %v1606
      %v1608 = vsel %vm448, %v1255, 0.0
      %v1609 = vadd.f32 %v1607, %v1608
      %v1610 = vrot.slane %v1609, 4
      %v1611 = vadd.f32 %v1609, %v1610
      %v1612 = vrot.slane %v1611, 2
      %v1613 = vadd.f32 %v1611, %v1612
      %v1614 = vrot.slane %v1613, 1
      %v1615 = vadd.f32 %v1613, %v1614
      %v1616 = vsel %vm438, %v1256, 0.0
      %v1617 = vsel %vm438, %v1257, 0.0
      %v1618 = vadd.f32 %v1616, %v1617
      %v1619 = vsel %vm438, %v1258, 0.0
      %v1620 = vadd.f32 %v1618, %v1619
      %v1621 = vsel %vm448, %v1259, 0.0
      %v1622 = vadd.f32 %v1620, %v1621
      %v1623 = vrot.slane %v1622, 4
      %v1624 = vadd.f32 %v1622, %v1623
      %v1625 = vrot.slane %v1624, 2
      %v1626 = vadd.f32 %v1624, %v1625
      %v1627 = vrot.slane %v1626, 1
      %v1628 = vadd.f32 %v1626, %v1627
      %v1629 = vsel %vm438, %v1260, 0.0
      %v1630 = vsel %vm438, %v1261, 0.0
      %v1631 = vadd.f32 %v1629, %v1630
      %v1632 = vsel %vm438, %v1262, 0.0
      %v1633 = vadd.f32 %v1631, %v1632
      %v1634 = vsel %vm448, %v1263, 0.0
      %v1635 = vadd.f32 %v1633, %v1634
      %v1636 = vrot.slane %v1635, 4
      %v1637 = vadd.f32 %v1635, %v1636
      %v1638 = vrot.slane %v1637, 2
      %v1639 = vadd.f32 %v1637, %v1638
      %v1640 = vrot.slane %v1639, 1
      %v1641 = vadd.f32 %v1639, %v1640
      %v1642 = vsel %vm438, %v1264, 0.0
      %v1643 = vsel %vm438, %v1265, 0.0
      %v1644 = vadd.f32 %v1642, %v1643
      %v1645 = vsel %vm438, %v1266, 0.0
      %v1646 = vadd.f32 %v1644, %v1645
      %v1647 = vsel %vm448, %v1267, 0.0
      %v1648 = vadd.f32 %v1646, %v1647
      %v1649 = vrot.slane %v1648, 4
      %v1650 = vadd.f32 %v1648, %v1649
      %v1651 = vrot.slane %v1650, 2
      %v1652 = vadd.f32 %v1650, %v1651
      %v1653 = vrot.slane %v1652, 1
      %v1654 = vadd.f32 %v1652, %v1653
      %v1655 = vsel %vm438, %v1268, 0.0
      %v1656 = vsel %vm438, %v1269, 0.0
      %v1657 = vadd.f32 %v1655, %v1656
      %v1658 = vsel %vm438, %v1270, 0.0
      %v1659 = vadd.f32 %v1657, %v1658
      %v1660 = vsel %vm448, %v1271, 0.0
      %v1661 = vadd.f32 %v1659, %v1660
      %v1662 = vrot.slane %v1661, 4
      %v1663 = vadd.f32 %v1661, %v1662
      %v1664 = vrot.slane %v1663, 2
      %v1665 = vadd.f32 %v1663, %v1664
      %v1666 = vrot.slane %v1665, 1
      %v1667 = vadd.f32 %v1665, %v1666
      %v1668 = vsel %vm438, %v1272, 0.0
      %v1669 = vsel %vm438, %v1273, 0.0
      %v1670 = vadd.f32 %v1668, %v1669
      %v1671 = vsel %vm438, %v1274, 0.0
      %v1672 = vadd.f32 %v1670, %v1671
      %v1673 = vsel %vm448, %v1275, 0.0
      %v1674 = vadd.f32 %v1672, %v1673
      %v1675 = vrot.slane %v1674, 4
      %v1676 = vadd.f32 %v1674, %v1675
      %v1677 = vrot.slane %v1676, 2
      %v1678 = vadd.f32 %v1676, %v1677
      %v1679 = vrot.slane %v1678, 1
      %v1680 = vadd.f32 %v1678, %v1679
      %v1681 = vsel %vm438, %v1276, 0.0
      %v1682 = vsel %vm438, %v1277, 0.0
      %v1683 = vadd.f32 %v1681, %v1682
      %v1684 = vsel %vm438, %v1278, 0.0
      %v1685 = vadd.f32 %v1683, %v1684
      %v1686 = vsel %vm448, %v1279, 0.0
      %v1687 = vadd.f32 %v1685, %v1686
      %v1688 = vrot.slane %v1687, 4
      %v1689 = vadd.f32 %v1687, %v1688
      %v1690 = vrot.slane %v1689, 2
      %v1691 = vadd.f32 %v1689, %v1690
      %v1692 = vrot.slane %v1691, 1
      %v1693 = vadd.f32 %v1691, %v1692
      %v1694 = vsel %vm438, %v1280, 0.0
      %v1695 = vsel %vm438, %v1281, 0.0
      %v1696 = vadd.f32 %v1694, %v1695
      %v1697 = vsel %vm438, %v1282, 0.0
      %v1698 = vadd.f32 %v1696, %v1697
      %v1699 = vsel %vm448, %v1283, 0.0
      %v1700 = vadd.f32 %v1698, %v1699
      %v1701 = vrot.slane %v1700, 4
      %v1702 = vadd.f32 %v1700, %v1701
      %v1703 = vrot.slane %v1702, 2
      %v1704 = vadd.f32 %v1702, %v1703
      %v1705 = vrot.slane %v1704, 1
      %v1706 = vadd.f32 %v1704, %v1705
      %v1707 = vsel %vm438, %v1284, 0.0
      %v1708 = vsel %vm438, %v1285, 0.0
      %v1709 = vadd.f32 %v1707, %v1708
      %v1710 = vsel %vm438, %v1286, 0.0
      %v1711 = vadd.f32 %v1709, %v1710
      %v1712 = vsel %vm448, %v1287, 0.0
      %v1713 = vadd.f32 %v1711, %v1712
      %v1714 = vrot.slane %v1713, 4
      %v1715 = vadd.f32 %v1713, %v1714
      %v1716 = vrot.slane %v1715, 2
      %v1717 = vadd.f32 %v1715, %v1716
      %v1718 = vrot.slane %v1717, 1
      %v1719 = vadd.f32 %v1717, %v1718
      %v1720 = vsel %vm438, %v1288, 0.0
      %v1721 = vsel %vm438, %v1289, 0.0
      %v1722 = vadd.f32 %v1720, %v1721
      %v1723 = vsel %vm438, %v1290, 0.0
      %v1724 = vadd.f32 %v1722, %v1723
      %v1725 = vsel %vm448, %v1291, 0.0
      %v1726 = vadd.f32 %v1724, %v1725
      %v1727 = vrot.slane %v1726, 4
      %v1728 = vadd.f32 %v1726, %v1727
      %v1729 = vrot.slane %v1728, 2
      %v1730 = vadd.f32 %v1728, %v1729
      %v1731 = vrot.slane %v1730, 1
      %v1732 = vadd.f32 %v1730, %v1731
      %v1733 = vsel %vm438, %v1292, 0.0
      %v1734 = vsel %vm438, %v1293, 0.0
      %v1735 = vadd.f32 %v1733, %v1734
      %v1736 = vsel %vm438, %v1294, 0.0
      %v1737 = vadd.f32 %v1735, %v1736
      %v1738 = vsel %vm448, %v1295, 0.0
      %v1739 = vadd.f32 %v1737, %v1738
      %v1740 = vrot.slane %v1739, 4
      %v1741 = vadd.f32 %v1739, %v1740
      %v1742 = vrot.slane %v1741, 2
      %v1743 = vadd.f32 %v1741, %v1742
      %v1744 = vrot.slane %v1743, 1
      %v1745 = vadd.f32 %v1743, %v1744
      %v1746 = vsel %vm438, %v1296, 0.0
      %v1747 = vsel %vm438, %v1297, 0.0
      %v1748 = vadd.f32 %v1746, %v1747
      %v1749 = vsel %vm438, %v1298, 0.0
      %v1750 = vadd.f32 %v1748, %v1749
      %v1751 = vsel %vm448, %v1299, 0.0
      %v1752 = vadd.f32 %v1750, %v1751
      %v1753 = vrot.slane %v1752, 4
      %v1754 = vadd.f32 %v1752, %v1753
      %v1755 = vrot.slane %v1754, 2
      %v1756 = vadd.f32 %v1754, %v1755
      %v1757 = vrot.slane %v1756, 1
      %v1758 = vadd.f32 %v1756, %v1757
      %v1759 = vsel %vm438, %v1300, 0.0
      %v1760 = vsel %vm438, %v1301, 0.0
      %v1761 = vadd.f32 %v1759, %v1760
      %v1762 = vsel %vm438, %v1302, 0.0
      %v1763 = vadd.f32 %v1761, %v1762
      %v1764 = vsel %vm448, %v1303, 0.0
      %v1765 = vadd.f32 %v1763, %v1764
      %v1766 = vrot.slane %v1765, 4
      %v1767 = vadd.f32 %v1765, %v1766
      %v1768 = vrot.slane %v1767, 2
      %v1769 = vadd.f32 %v1767, %v1768
      %v1770 = vrot.slane %v1769, 1
      %v1771 = vadd.f32 %v1769, %v1770
      %v1772 = vrcp.pop 25.0
      %v1773 = vmul.f32 %v1316, %v1772
      %v1774 = vmul.f32 %v1329, %v1772
      %v1775 = vmul.f32 %v1342, %v1772
      %v1776 = vmul.f32 %v1355, %v1772
      %v1777 = vmul.f32 %v1368, %v1772
      %v1778 = vmul.f32 %v1381, %v1772
      %v1779 = vmul.f32 %v1394, %v1772
      %v1780 = vmul.f32 %v1407, %v1772
      %v1781 = vmul.f32 %v1420, %v1772
      %v1782 = vmul.f32 %v1433, %v1772
      %v1783 = vmul.f32 %v1446, %v1772
      %v1784 = vmul.f32 %v1459, %v1772
      %v1785 = vmul.f32 %v1472, %v1772
      %v1786 = vmul.f32 %v1485, %v1772
      %v1787 = vmul.f32 %v1498, %v1772
      %v1788 = vmul.f32 %v1511, %v1772
      %v1789 = vmul.f32 %v1524, %v1772
      %v1790 = vmul.f32 %v1537, %v1772
      %v1791 = vmul.f32 %v1550, %v1772
      %v1792 = vmul.f32 %v1563, %v1772
      %v1793 = vmul.f32 %v1576, %v1772
      %v1794 = vmul.f32 %v1589, %v1772
      %v1795 = vmul.f32 %v1602, %v1772
      %v1796 = vmul.f32 %v1615, %v1772
      %v1797 = vmul.f32 %v1628, %v1772
      %v1798 = vmul.f32 %v1641, %v1772
      %v1799 = vmul.f32 %v1654, %v1772
      %v1800 = vmul.f32 %v1667, %v1772
      %v1801 = vmul.f32 %v1680, %v1772
      %v1802 = vmul.f32 %v1693, %v1772
      %v1803 = vmul.f32 %v1706, %v1772
      %v1804 = vmul.f32 %v1719, %v1772
      %v1805 = vmul.f32 %v1732, %v1772
      %v1806 = vmul.f32 %v1745, %v1772
      %v1807 = vmul.f32 %v1758, %v1772
      %v1808 = vmul.f32 %v1771, %v1772
      %v1809 = vmul.f32 %v1160, %v1773
      %v1810 = vmul.f32 %v1161, %v1773
      %v1811 = vmul.f32 %v1162, %v1773
      %v1812 = vmul.f32 %v1163, %v1773
      %v1813 = vmul.f32 %v1164, %v1774
      %v1814 = vmul.f32 %v1165, %v1774
      %v1815 = vmul.f32 %v1166, %v1774
      %v1816 = vmul.f32 %v1167, %v1774
      %v1817 = vmul.f32 %v1168, %v1775
      %v1818 = vmul.f32 %v1169, %v1775
      %v1819 = vmul.f32 %v1170, %v1775
      %v1820 = vmul.f32 %v1171, %v1775
      %v1821 = vmul.f32 %v1172, %v1776
      %v1822 = vmul.f32 %v1173, %v1776
      %v1823 = vmul.f32 %v1174, %v1776
      %v1824 = vmul.f32 %v1175, %v1776
      %v1825 = vmul.f32 %v1176, %v1777
      %v1826 = vmul.f32 %v1177, %v1777
      %v1827 = vmul.f32 %v1178, %v1777
      %v1828 = vmul.f32 %v1179, %v1777
      %v1829 = vmul.f32 %v1180, %v1778
      %v1830 = vmul.f32 %v1181, %v1778
      %v1831 = vmul.f32 %v1182, %v1778
      %v1832 = vmul.f32 %v1183, %v1778
      %v1833 = vmul.f32 %v1184, %v1779
      %v1834 = vmul.f32 %v1185, %v1779
      %v1835 = vmul.f32 %v1186, %v1779
      %v1836 = vmul.f32 %v1187, %v1779
      %v1837 = vmul.f32 %v1188, %v1780
      %v1838 = vmul.f32 %v1189, %v1780
      %v1839 = vmul.f32 %v1190, %v1780
      %v1840 = vmul.f32 %v1191, %v1780
      %v1841 = vmul.f32 %v1192, %v1781
      %v1842 = vmul.f32 %v1193, %v1781
      %v1843 = vmul.f32 %v1194, %v1781
      %v1844 = vmul.f32 %v1195, %v1781
      %v1845 = vmul.f32 %v1196, %v1782
      %v1846 = vmul.f32 %v1197, %v1782
      %v1847 = vmul.f32 %v1198, %v1782
      %v1848 = vmul.f32 %v1199, %v1782
      %v1849 = vmul.f32 %v1200, %v1783
      %v1850 = vmul.f32 %v1201, %v1783
      %v1851 = vmul.f32 %v1202, %v1783
      %v1852 = vmul.f32 %v1203, %v1783
      %v1853 = vmul.f32 %v1204, %v1784
      %v1854 = vmul.f32 %v1205, %v1784
      %v1855 = vmul.f32 %v1206, %v1784
      %v1856 = vmul.f32 %v1207, %v1784
      %v1857 = vmul.f32 %v1208, %v1785
      %v1858 = vmul.f32 %v1209, %v1785
      %v1859 = vmul.f32 %v1210, %v1785
      %v1860 = vmul.f32 %v1211, %v1785
      %v1861 = vmul.f32 %v1212, %v1786
      %v1862 = vmul.f32 %v1213, %v1786
      %v1863 = vmul.f32 %v1214, %v1786
      %v1864 = vmul.f32 %v1215, %v1786
      %v1865 = vmul.f32 %v1216, %v1787
      %v1866 = vmul.f32 %v1217, %v1787
      %v1867 = vmul.f32 %v1218, %v1787
      %v1868 = vmul.f32 %v1219, %v1787
      %v1869 = vmul.f32 %v1220, %v1788
      %v1870 = vmul.f32 %v1221, %v1788
      %v1871 = vmul.f32 %v1222, %v1788
      %v1872 = vmul.f32 %v1223, %v1788
      %v1873 = vmul.f32 %v1224, %v1789
      %v1874 = vmul.f32 %v1225, %v1789
      %v1875 = vmul.f32 %v1226, %v1789
      %v1876 = vmul.f32 %v1227, %v1789
      %v1877 = vmul.f32 %v1228, %v1790
      %v1878 = vmul.f32 %v1229, %v1790
      %v1879 = vmul.f32 %v1230, %v1790
      %v1880 = vmul.f32 %v1231, %v1790
      %v1881 = vmul.f32 %v1232, %v1791
      %v1882 = vmul.f32 %v1233, %v1791
      %v1883 = vmul.f32 %v1234, %v1791
      %v1884 = vmul.f32 %v1235, %v1791
      %v1885 = vmul.f32 %v1236, %v1792
      %v1886 = vmul.f32 %v1237, %v1792
      %v1887 = vmul.f32 %v1238, %v1792
      %v1888 = vmul.f32 %v1239, %v1792
      %v1889 = vmul.f32 %v1240, %v1793
      %v1890 = vmul.f32 %v1241, %v1793
      %v1891 = vmul.f32 %v1242, %v1793
      %v1892 = vmul.f32 %v1243, %v1793
      %v1893 = vmul.f32 %v1244, %v1794
      %v1894 = vmul.f32 %v1245, %v1794
      %v1895 = vmul.f32 %v1246, %v1794
      %v1896 = vmul.f32 %v1247, %v1794
      %v1897 = vmul.f32 %v1248, %v1795
      %v1898 = vmul.f32 %v1249, %v1795
      %v1899 = vmul.f32 %v1250, %v1795
      %v1900 = vmul.f32 %v1251, %v1795
      %v1901 = vmul.f32 %v1252, %v1796
      %v1902 = vmul.f32 %v1253, %v1796
      %v1903 = vmul.f32 %v1254, %v1796
      %v1904 = vmul.f32 %v1255, %v1796
      %v1905 = vmul.f32 %v1256, %v1797
      %v1906 = vmul.f32 %v1257, %v1797
      %v1907 = vmul.f32 %v1258, %v1797
      %v1908 = vmul.f32 %v1259, %v1797
      %v1909 = vmul.f32 %v1260, %v1798
      %v1910 = vmul.f32 %v1261, %v1798
      %v1911 = vmul.f32 %v1262, %v1798
      %v1912 = vmul.f32 %v1263, %v1798
      %v1913 = vmul.f32 %v1264, %v1799
      %v1914 = vmul.f32 %v1265, %v1799
      %v1915 = vmul.f32 %v1266, %v1799
      %v1916 = vmul.f32 %v1267, %v1799
      %v1917 = vmul.f32 %v1268, %v1800
      %v1918 = vmul.f32 %v1269, %v1800
      %v1919 = vmul.f32 %v1270, %v1800
      %v1920 = vmul.f32 %v1271, %v1800
      %v1921 = vmul.f32 %v1272, %v1801
      %v1922 = vmul.f32 %v1273, %v1801
      %v1923 = vmul.f32 %v1274, %v1801
      %v1924 = vmul.f32 %v1275, %v1801
      %v1925 = vmul.f32 %v1276, %v1802
      %v1926 = vmul.f32 %v1277, %v1802
      %v1927 = vmul.f32 %v1278, %v1802
      %v1928 = vmul.f32 %v1279, %v1802
      %v1929 = vmul.f32 %v1280, %v1803
      %v1930 = vmul.f32 %v1281, %v1803
      %v1931 = vmul.f32 %v1282, %v1803
      %v1932 = vmul.f32 %v1283, %v1803
      %v1933 = vmul.f32 %v1284, %v1804
      %v1934 = vmul.f32 %v1285, %v1804
      %v1935 = vmul.f32 %v1286, %v1804
      %v1936 = vmul.f32 %v1287, %v1804
      %v1937 = vmul.f32 %v1288, %v1805
      %v1938 = vmul.f32 %v1289, %v1805
      %v1939 = vmul.f32 %v1290, %v1805
      %v1940 = vmul.f32 %v1291, %v1805
      %v1941 = vmul.f32 %v1292, %v1806
      %v1942 = vmul.f32 %v1293, %v1806
      %v1943 = vmul.f32 %v1294, %v1806
      %v1944 = vmul.f32 %v1295, %v1806
      %v1945 = vmul.f32 %v1296, %v1807
      %v1946 = vmul.f32 %v1297, %v1807
      %v1947 = vmul.f32 %v1298, %v1807
      %v1948 = vmul.f32 %v1299, %v1807
      %v1949 = vmul.f32 %v1300, %v1808
      %v1950 = vmul.f32 %v1301, %v1808
      %v1951 = vmul.f32 %v1302, %v1808
      %v1952 = vmul.f32 %v1303, %v1808
      %v1953 = vsel %vm438, %v1809, 0.0
      %1954 = vadd.xlane.f32.xlu0 %v1953
      %v1955 = vpop.xlane.xlu0 %1954
      %v1956 = vsel %vm438, %v1810, 0.0
      %1957 = vadd.xlane.f32.xlu0 %v1956
      %v1958 = vpop.xlane.xlu0 %1957
      %v1959 = vsel %vm438, %v1811, 0.0
      %1960 = vadd.xlane.f32.xlu0 %v1959
      %v1961 = vpop.xlane.xlu0 %1960
      %v1962 = vsel %vm448, %v1812, 0.0
      %1963 = vadd.xlane.f32.xlu0 %v1962
      %v1964 = vpop.xlane.xlu0 %1963
      %v1965 = vsel %vm438, %v1813, 0.0
      %1966 = vadd.xlane.f32.xlu0 %v1965
      %v1967 = vpop.xlane.xlu0 %1966
      %v1968 = vsel %vm438, %v1814, 0.0
      %1969 = vadd.xlane.f32.xlu0 %v1968
      %v1970 = vpop.xlane.xlu0 %1969
      %v1971 = vsel %vm438, %v1815, 0.0
      %1972 = vadd.xlane.f32.xlu0 %v1971
      %v1973 = vpop.xlane.xlu0 %1972
      %v1974 = vsel %vm448, %v1816, 0.0
      %1975 = vadd.xlane.f32.xlu0 %v1974
      %v1976 = vpop.xlane.xlu0 %1975
      %v1977 = vsel %vm438, %v1817, 0.0
      %1978 = vadd.xlane.f32.xlu0 %v1977
      %v1979 = vpop.xlane.xlu0 %1978
      %v1980 = vsel %vm438, %v1818, 0.0
      %1981 = vadd.xlane.f32.xlu0 %v1980
      %v1982 = vpop.xlane.xlu0 %1981
      %v1983 = vsel %vm438, %v1819, 0.0
      %1984 = vadd.xlane.f32.xlu0 %v1983
      %v1985 = vpop.xlane.xlu0 %1984
      %v1986 = vsel %vm448, %v1820, 0.0
      %1987 = vadd.xlane.f32.xlu0 %v1986
      %v1988 = vpop.xlane.xlu0 %1987
      %v1989 = vsel %vm438, %v1821, 0.0
      %1990 = vadd.xlane.f32.xlu0 %v1989
      %v1991 = vpop.xlane.xlu0 %1990
      %v1992 = vsel %vm438, %v1822, 0.0
      %1993 = vadd.xlane.f32.xlu0 %v1992
      %v1994 = vpop.xlane.xlu0 %1993
      %v1995 = vsel %vm438, %v1823, 0.0
      %1996 = vadd.xlane.f32.xlu0 %v1995
      %v1997 = vpop.xlane.xlu0 %1996
      %v1998 = vsel %vm448, %v1824, 0.0
      %1999 = vadd.xlane.f32.xlu0 %v1998
      %v2000 = vpop.xlane.xlu0 %1999
      %v2001 = vsel %vm438, %v1825, 0.0
      %2002 = vadd.xlane.f32.xlu0 %v2001
      %v2003 = vpop.xlane.xlu0 %2002
      %v2004 = vsel %vm438, %v1826, 0.0
      %2005 = vadd.xlane.f32.xlu0 %v2004
      %v2006 = vpop.xlane.xlu0 %2005
      %v2007 = vsel %vm438, %v1827, 0.0
      %2008 = vadd.xlane.f32.xlu0 %v2007
      %v2009 = vpop.xlane.xlu0 %2008
      %v2010 = vsel %vm448, %v1828, 0.0
      %2011 = vadd.xlane.f32.xlu0 %v2010
      %v2012 = vpop.xlane.xlu0 %2011
      %v2013 = vsel %vm438, %v1829, 0.0
      %2014 = vadd.xlane.f32.xlu0 %v2013
      %v2015 = vpop.xlane.xlu0 %2014
      %v2016 = vsel %vm438, %v1830, 0.0
      %2017 = vadd.xlane.f32.xlu0 %v2016
      %v2018 = vpop.xlane.xlu0 %2017
      %v2019 = vsel %vm438, %v1831, 0.0
      %2020 = vadd.xlane.f32.xlu0 %v2019
      %v2021 = vpop.xlane.xlu0 %2020
      %v2022 = vsel %vm448, %v1832, 0.0
      %2023 = vadd.xlane.f32.xlu0 %v2022
      %v2024 = vpop.xlane.xlu0 %2023
      %v2025 = vsel %vm438, %v1833, 0.0
      %2026 = vadd.xlane.f32.xlu0 %v2025
      %v2027 = vpop.xlane.xlu0 %2026
      %v2028 = vsel %vm438, %v1834, 0.0
      %2029 = vadd.xlane.f32.xlu0 %v2028
      %v2030 = vpop.xlane.xlu0 %2029
      %v2031 = vsel %vm438, %v1835, 0.0
      %2032 = vadd.xlane.f32.xlu0 %v2031
      %v2033 = vpop.xlane.xlu0 %2032
      %v2034 = vsel %vm448, %v1836, 0.0
      %2035 = vadd.xlane.f32.xlu0 %v2034
      %v2036 = vpop.xlane.xlu0 %2035
      %v2037 = vsel %vm438, %v1837, 0.0
      %2038 = vadd.xlane.f32.xlu0 %v2037
      %v2039 = vpop.xlane.xlu0 %2038
      %v2040 = vsel %vm438, %v1838, 0.0
      %2041 = vadd.xlane.f32.xlu0 %v2040
      %v2042 = vpop.xlane.xlu0 %2041
      %v2043 = vsel %vm438, %v1839, 0.0
      %2044 = vadd.xlane.f32.xlu0 %v2043
      %v2045 = vpop.xlane.xlu0 %2044
      %v2046 = vsel %vm448, %v1840, 0.0
      %2047 = vadd.xlane.f32.xlu0 %v2046
      %v2048 = vpop.xlane.xlu0 %2047
      %v2049 = vsel %vm438, %v1841, 0.0
      %2050 = vadd.xlane.f32.xlu0 %v2049
      %v2051 = vpop.xlane.xlu0 %2050
      %v2052 = vsel %vm438, %v1842, 0.0
      %2053 = vadd.xlane.f32.xlu0 %v2052
      %v2054 = vpop.xlane.xlu0 %2053
      %v2055 = vsel %vm438, %v1843, 0.0
      %2056 = vadd.xlane.f32.xlu0 %v2055
      %v2057 = vpop.xlane.xlu0 %2056
      %v2058 = vsel %vm448, %v1844, 0.0
      %2059 = vadd.xlane.f32.xlu0 %v2058
      %v2060 = vpop.xlane.xlu0 %2059
      %v2061 = vsel %vm438, %v1845, 0.0
      %2062 = vadd.xlane.f32.xlu0 %v2061
      %v2063 = vpop.xlane.xlu0 %2062
      %v2064 = vsel %vm438, %v1846, 0.0
      %2065 = vadd.xlane.f32.xlu0 %v2064
      %v2066 = vpop.xlane.xlu0 %2065
      %v2067 = vsel %vm438, %v1847, 0.0
      %2068 = vadd.xlane.f32.xlu0 %v2067
      %v2069 = vpop.xlane.xlu0 %2068
      %v2070 = vsel %vm448, %v1848, 0.0
      %2071 = vadd.xlane.f32.xlu0 %v2070
      %v2072 = vpop.xlane.xlu0 %2071
      %v2073 = vsel %vm438, %v1849, 0.0
      %2074 = vadd.xlane.f32.xlu0 %v2073
      %v2075 = vpop.xlane.xlu0 %2074
      %v2076 = vsel %vm438, %v1850, 0.0
      %2077 = vadd.xlane.f32.xlu0 %v2076
      %v2078 = vpop.xlane.xlu0 %2077
      %v2079 = vsel %vm438, %v1851, 0.0
      %2080 = vadd.xlane.f32.xlu0 %v2079
      %v2081 = vpop.xlane.xlu0 %2080
      %v2082 = vsel %vm448, %v1852, 0.0
      %2083 = vadd.xlane.f32.xlu0 %v2082
      %v2084 = vpop.xlane.xlu0 %2083
      %v2085 = vsel %vm438, %v1853, 0.0
      %2086 = vadd.xlane.f32.xlu0 %v2085
      %v2087 = vpop.xlane.xlu0 %2086
      %v2088 = vsel %vm438, %v1854, 0.0
      %2089 = vadd.xlane.f32.xlu0 %v2088
      %v2090 = vpop.xlane.xlu0 %2089
      %v2091 = vsel %vm438, %v1855, 0.0
      %2092 = vadd.xlane.f32.xlu0 %v2091
      %v2093 = vpop.xlane.xlu0 %2092
      %v2094 = vsel %vm448, %v1856, 0.0
      %2095 = vadd.xlane.f32.xlu0 %v2094
      %v2096 = vpop.xlane.xlu0 %2095
      %v2097 = vsel %vm438, %v1857, 0.0
      %2098 = vadd.xlane.f32.xlu0 %v2097
      %v2099 = vpop.xlane.xlu0 %2098
      %v2100 = vsel %vm438, %v1858, 0.0
      %2101 = vadd.xlane.f32.xlu0 %v2100
      %v2102 = vpop.xlane.xlu0 %2101
      %v2103 = vsel %vm438, %v1859, 0.0
      %2104 = vadd.xlane.f32.xlu0 %v2103
      %v2105 = vpop.xlane.xlu0 %2104
      %v2106 = vsel %vm448, %v1860, 0.0
      %2107 = vadd.xlane.f32.xlu0 %v2106
      %v2108 = vpop.xlane.xlu0 %2107
      %v2109 = vsel %vm438, %v1861, 0.0
      %2110 = vadd.xlane.f32.xlu0 %v2109
      %v2111 = vpop.xlane.xlu0 %2110
      %v2112 = vsel %vm438, %v1862, 0.0
      %2113 = vadd.xlane.f32.xlu0 %v2112
      %v2114 = vpop.xlane.xlu0 %2113
      %v2115 = vsel %vm438, %v1863, 0.0
      %2116 = vadd.xlane.f32.xlu0 %v2115
      %v2117 = vpop.xlane.xlu0 %2116
      %v2118 = vsel %vm448, %v1864, 0.0
      %2119 = vadd.xlane.f32.xlu0 %v2118
      %v2120 = vpop.xlane.xlu0 %2119
      %v2121 = vsel %vm438, %v1865, 0.0
      %2122 = vadd.xlane.f32.xlu0 %v2121
      %v2123 = vpop.xlane.xlu0 %2122
      %v2124 = vsel %vm438, %v1866, 0.0
      %2125 = vadd.xlane.f32.xlu0 %v2124
      %v2126 = vpop.xlane.xlu0 %2125
      %v2127 = vsel %vm438, %v1867, 0.0
      %2128 = vadd.xlane.f32.xlu0 %v2127
      %v2129 = vpop.xlane.xlu0 %2128
      %v2130 = vsel %vm448, %v1868, 0.0
      %2131 = vadd.xlane.f32.xlu0 %v2130
      %v2132 = vpop.xlane.xlu0 %2131
      %v2133 = vsel %vm438, %v1869, 0.0
      %2134 = vadd.xlane.f32.xlu0 %v2133
      %v2135 = vpop.xlane.xlu0 %2134
      %v2136 = vsel %vm438, %v1870, 0.0
      %2137 = vadd.xlane.f32.xlu0 %v2136
      %v2138 = vpop.xlane.xlu0 %2137
      %v2139 = vsel %vm438, %v1871, 0.0
      %2140 = vadd.xlane.f32.xlu0 %v2139
      %v2141 = vpop.xlane.xlu0 %2140
      %v2142 = vsel %vm448, %v1872, 0.0
      %2143 = vadd.xlane.f32.xlu0 %v2142
      %v2144 = vpop.xlane.xlu0 %2143
      %v2145 = vsel %vm438, %v1873, 0.0
      %2146 = vadd.xlane.f32.xlu0 %v2145
      %v2147 = vpop.xlane.xlu0 %2146
      %v2148 = vsel %vm438, %v1874, 0.0
      %2149 = vadd.xlane.f32.xlu0 %v2148
      %v2150 = vpop.xlane.xlu0 %2149
      %v2151 = vsel %vm438, %v1875, 0.0
      %2152 = vadd.xlane.f32.xlu0 %v2151
      %v2153 = vpop.xlane.xlu0 %2152
      %v2154 = vsel %vm448, %v1876, 0.0
      %2155 = vadd.xlane.f32.xlu0 %v2154
      %v2156 = vpop.xlane.xlu0 %2155
      %v2157 = vsel %vm438, %v1877, 0.0
      %2158 = vadd.xlane.f32.xlu0 %v2157
      %v2159 = vpop.xlane.xlu0 %2158
      %v2160 = vsel %vm438, %v1878, 0.0
      %2161 = vadd.xlane.f32.xlu0 %v2160
      %v2162 = vpop.xlane.xlu0 %2161
      %v2163 = vsel %vm438, %v1879, 0.0
      %2164 = vadd.xlane.f32.xlu0 %v2163
      %v2165 = vpop.xlane.xlu0 %2164
      %v2166 = vsel %vm448, %v1880, 0.0
      %2167 = vadd.xlane.f32.xlu0 %v2166
      %v2168 = vpop.xlane.xlu0 %2167
      %v2169 = vsel %vm438, %v1881, 0.0
      %2170 = vadd.xlane.f32.xlu0 %v2169
      %v2171 = vpop.xlane.xlu0 %2170
      %v2172 = vsel %vm438, %v1882, 0.0
      %2173 = vadd.xlane.f32.xlu0 %v2172
      %v2174 = vpop.xlane.xlu0 %2173
      %v2175 = vsel %vm438, %v1883, 0.0
      %2176 = vadd.xlane.f32.xlu0 %v2175
      %v2177 = vpop.xlane.xlu0 %2176
      %v2178 = vsel %vm448, %v1884, 0.0
      %2179 = vadd.xlane.f32.xlu0 %v2178
      %v2180 = vpop.xlane.xlu0 %2179
      %v2181 = vsel %vm438, %v1885, 0.0
      %2182 = vadd.xlane.f32.xlu0 %v2181
      %v2183 = vpop.xlane.xlu0 %2182
      %v2184 = vsel %vm438, %v1886, 0.0
      %2185 = vadd.xlane.f32.xlu0 %v2184
      %v2186 = vpop.xlane.xlu0 %2185
      %v2187 = vsel %vm438, %v1887, 0.0
      %2188 = vadd.xlane.f32.xlu0 %v2187
      %v2189 = vpop.xlane.xlu0 %2188
      %v2190 = vsel %vm448, %v1888, 0.0
      %2191 = vadd.xlane.f32.xlu0 %v2190
      %v2192 = vpop.xlane.xlu0 %2191
      %v2193 = vsel %vm438, %v1889, 0.0
      %2194 = vadd.xlane.f32.xlu0 %v2193
      %v2195 = vpop.xlane.xlu0 %2194
      %v2196 = vsel %vm438, %v1890, 0.0
      %2197 = vadd.xlane.f32.xlu0 %v2196
      %v2198 = vpop.xlane.xlu0 %2197
      %v2199 = vsel %vm438, %v1891, 0.0
      %2200 = vadd.xlane.f32.xlu0 %v2199
      %v2201 = vpop.xlane.xlu0 %2200
      %v2202 = vsel %vm448, %v1892, 0.0
      %2203 = vadd.xlane.f32.xlu0 %v2202
      %v2204 = vpop.xlane.xlu0 %2203
      %v2205 = vsel %vm438, %v1893, 0.0
      %2206 = vadd.xlane.f32.xlu0 %v2205
      %v2207 = vpop.xlane.xlu0 %2206
      %v2208 = vsel %vm438, %v1894, 0.0
      %2209 = vadd.xlane.f32.xlu0 %v2208
      %v2210 = vpop.xlane.xlu0 %2209
      %v2211 = vsel %vm438, %v1895, 0.0
      %2212 = vadd.xlane.f32.xlu0 %v2211
      %v2213 = vpop.xlane.xlu0 %2212
      %v2214 = vsel %vm448, %v1896, 0.0
      %2215 = vadd.xlane.f32.xlu0 %v2214
      %v2216 = vpop.xlane.xlu0 %2215
      %v2217 = vsel %vm438, %v1897, 0.0
      %2218 = vadd.xlane.f32.xlu0 %v2217
      %v2219 = vpop.xlane.xlu0 %2218
      %v2220 = vsel %vm438, %v1898, 0.0
      %2221 = vadd.xlane.f32.xlu0 %v2220
      %v2222 = vpop.xlane.xlu0 %2221
      %v2223 = vsel %vm438, %v1899, 0.0
      %2224 = vadd.xlane.f32.xlu0 %v2223
      %v2225 = vpop.xlane.xlu0 %2224
      %v2226 = vsel %vm448, %v1900, 0.0
      %2227 = vadd.xlane.f32.xlu0 %v2226
      %v2228 = vpop.xlane.xlu0 %2227
      %v2229 = vsel %vm438, %v1901, 0.0
      %2230 = vadd.xlane.f32.xlu0 %v2229
      %v2231 = vpop.xlane.xlu0 %2230
      %v2232 = vsel %vm438, %v1902, 0.0
      %2233 = vadd.xlane.f32.xlu0 %v2232
      %v2234 = vpop.xlane.xlu0 %2233
      %v2235 = vsel %vm438, %v1903, 0.0
      %2236 = vadd.xlane.f32.xlu0 %v2235
      %v2237 = vpop.xlane.xlu0 %2236
      %v2238 = vsel %vm448, %v1904, 0.0
      %2239 = vadd.xlane.f32.xlu0 %v2238
      %v2240 = vpop.xlane.xlu0 %2239
      %v2241 = vsel %vm438, %v1905, 0.0
      %2242 = vadd.xlane.f32.xlu0 %v2241
      %v2243 = vpop.xlane.xlu0 %2242
      %v2244 = vsel %vm438, %v1906, 0.0
      %2245 = vadd.xlane.f32.xlu0 %v2244
      %v2246 = vpop.xlane.xlu0 %2245
      %v2247 = vsel %vm438, %v1907, 0.0
      %2248 = vadd.xlane.f32.xlu0 %v2247
      %v2249 = vpop.xlane.xlu0 %2248
      %v2250 = vsel %vm448, %v1908, 0.0
      %2251 = vadd.xlane.f32.xlu0 %v2250
      %v2252 = vpop.xlane.xlu0 %2251
      %v2253 = vsel %vm438, %v1909, 0.0
      %2254 = vadd.xlane.f32.xlu0 %v2253
      %v2255 = vpop.xlane.xlu0 %2254
      %v2256 = vsel %vm438, %v1910, 0.0
      %2257 = vadd.xlane.f32.xlu0 %v2256
      %v2258 = vpop.xlane.xlu0 %2257
      %v2259 = vsel %vm438, %v1911, 0.0
      %2260 = vadd.xlane.f32.xlu0 %v2259
      %v2261 = vpop.xlane.xlu0 %2260
      %v2262 = vsel %vm448, %v1912, 0.0
      %2263 = vadd.xlane.f32.xlu0 %v2262
      %v2264 = vpop.xlane.xlu0 %2263
      %v2265 = vsel %vm438, %v1913, 0.0
      %2266 = vadd.xlane.f32.xlu0 %v2265
      %v2267 = vpop.xlane.xlu0 %2266
      %v2268 = vsel %vm438, %v1914, 0.0
      %2269 = vadd.xlane.f32.xlu0 %v2268
      %v2270 = vpop.xlane.xlu0 %2269
      %v2271 = vsel %vm438, %v1915, 0.0
      %2272 = vadd.xlane.f32.xlu0 %v2271
      %v2273 = vpop.xlane.xlu0 %2272
      %v2274 = vsel %vm448, %v1916, 0.0
      %2275 = vadd.xlane.f32.xlu0 %v2274
      %v2276 = vpop.xlane.xlu0 %2275
      %v2277 = vsel %vm438, %v1917, 0.0
      %2278 = vadd.xlane.f32.xlu0 %v2277
      %v2279 = vpop.xlane.xlu0 %2278
      %v2280 = vsel %vm438, %v1918, 0.0
      %2281 = vadd.xlane.f32.xlu0 %v2280
      %v2282 = vpop.xlane.xlu0 %2281
      %v2283 = vsel %vm438, %v1919, 0.0
      %2284 = vadd.xlane.f32.xlu0 %v2283
      %v2285 = vpop.xlane.xlu0 %2284
      %v2286 = vsel %vm448, %v1920, 0.0
      %2287 = vadd.xlane.f32.xlu0 %v2286
      %v2288 = vpop.xlane.xlu0 %2287
      %v2289 = vsel %vm438, %v1921, 0.0
      %2290 = vadd.xlane.f32.xlu0 %v2289
      %v2291 = vpop.xlane.xlu0 %2290
      %v2292 = vsel %vm438, %v1922, 0.0
      %2293 = vadd.xlane.f32.xlu0 %v2292
      %v2294 = vpop.xlane.xlu0 %2293
      %v2295 = vsel %vm438, %v1923, 0.0
      %2296 = vadd.xlane.f32.xlu0 %v2295
      %v2297 = vpop.xlane.xlu0 %2296
      %v2298 = vsel %vm448, %v1924, 0.0
      %2299 = vadd.xlane.f32.xlu0 %v2298
      %v2300 = vpop.xlane.xlu0 %2299
      %v2301 = vsel %vm438, %v1925, 0.0
      %2302 = vadd.xlane.f32.xlu0 %v2301
      %v2303 = vpop.xlane.xlu0 %2302
      %v2304 = vsel %vm438, %v1926, 0.0
      %2305 = vadd.xlane.f32.xlu0 %v2304
      %v2306 = vpop.xlane.xlu0 %2305
      %v2307 = vsel %vm438, %v1927, 0.0
      %2308 = vadd.xlane.f32.xlu0 %v2307
      %v2309 = vpop.xlane.xlu0 %2308
      %v2310 = vsel %vm448, %v1928, 0.0
      %2311 = vadd.xlane.f32.xlu0 %v2310
      %v2312 = vpop.xlane.xlu0 %2311
      %v2313 = vsel %vm438, %v1929, 0.0
      %2314 = vadd.xlane.f32.xlu0 %v2313
      %v2315 = vpop.xlane.xlu0 %2314
      %v2316 = vsel %vm438, %v1930, 0.0
      %2317 = vadd.xlane.f32.xlu0 %v2316
      %v2318 = vpop.xlane.xlu0 %2317
      %v2319 = vsel %vm438, %v1931, 0.0
      %2320 = vadd.xlane.f32.xlu0 %v2319
      %v2321 = vpop.xlane.xlu0 %2320
      %v2322 = vsel %vm448, %v1932, 0.0
      %2323 = vadd.xlane.f32.xlu0 %v2322
      %v2324 = vpop.xlane.xlu0 %2323
      %v2325 = vsel %vm438, %v1933, 0.0
      %2326 = vadd.xlane.f32.xlu0 %v2325
      %v2327 = vpop.xlane.xlu0 %2326
      %v2328 = vsel %vm438, %v1934, 0.0
      %2329 = vadd.xlane.f32.xlu0 %v2328
      %v2330 = vpop.xlane.xlu0 %2329
      %v2331 = vsel %vm438, %v1935, 0.0
      %2332 = vadd.xlane.f32.xlu0 %v2331
      %v2333 = vpop.xlane.xlu0 %2332
      %v2334 = vsel %vm448, %v1936, 0.0
      %2335 = vadd.xlane.f32.xlu0 %v2334
      %v2336 = vpop.xlane.xlu0 %2335
      %v2337 = vsel %vm438, %v1937, 0.0
      %2338 = vadd.xlane.f32.xlu0 %v2337
      %v2339 = vpop.xlane.xlu0 %2338
      %v2340 = vsel %vm438, %v1938, 0.0
      %2341 = vadd.xlane.f32.xlu0 %v2340
      %v2342 = vpop.xlane.xlu0 %2341
      %v2343 = vsel %vm438, %v1939, 0.0
      %2344 = vadd.xlane.f32.xlu0 %v2343
      %v2345 = vpop.xlane.xlu0 %2344
      %v2346 = vsel %vm448, %v1940, 0.0
      %2347 = vadd.xlane.f32.xlu0 %v2346
      %v2348 = vpop.xlane.xlu0 %2347
      %v2349 = vsel %vm438, %v1941, 0.0
      %2350 = vadd.xlane.f32.xlu0 %v2349
      %v2351 = vpop.xlane.xlu0 %2350
      %v2352 = vsel %vm438, %v1942, 0.0
      %2353 = vadd.xlane.f32.xlu0 %v2352
      %v2354 = vpop.xlane.xlu0 %2353
      %v2355 = vsel %vm438, %v1943, 0.0
      %2356 = vadd.xlane.f32.xlu0 %v2355
      %v2357 = vpop.xlane.xlu0 %2356
      %v2358 = vsel %vm448, %v1944, 0.0
      %2359 = vadd.xlane.f32.xlu0 %v2358
      %v2360 = vpop.xlane.xlu0 %2359
      %v2361 = vsel %vm438, %v1945, 0.0
      %2362 = vadd.xlane.f32.xlu0 %v2361
      %v2363 = vpop.xlane.xlu0 %2362
      %v2364 = vsel %vm438, %v1946, 0.0
      %2365 = vadd.xlane.f32.xlu0 %v2364
      %v2366 = vpop.xlane.xlu0 %2365
      %v2367 = vsel %vm438, %v1947, 0.0
      %2368 = vadd.xlane.f32.xlu0 %v2367
      %v2369 = vpop.xlane.xlu0 %2368
      %v2370 = vsel %vm448, %v1948, 0.0
      %2371 = vadd.xlane.f32.xlu0 %v2370
      %v2372 = vpop.xlane.xlu0 %2371
      %v2373 = vsel %vm438, %v1949, 0.0
      %2374 = vadd.xlane.f32.xlu0 %v2373
      %v2375 = vpop.xlane.xlu0 %2374
      %v2376 = vsel %vm438, %v1950, 0.0
      %2377 = vadd.xlane.f32.xlu0 %v2376
      %v2378 = vpop.xlane.xlu0 %2377
      %v2379 = vsel %vm438, %v1951, 0.0
      %2380 = vadd.xlane.f32.xlu0 %v2379
      %v2381 = vpop.xlane.xlu0 %2380
      %v2382 = vsel %vm448, %v1952, 0.0
      %2383 = vadd.xlane.f32.xlu0 %v2382
      %v2384 = vpop.xlane.xlu0 %2383
      %v2529 = vlaneseq
      %v2530 = vand.u32 %v2529, 127
      %v2531 = vlaneseq
      %v2532 = vshrl.u32 %v2531, 7
      %v2533 = vsub.s32 %v2530, %v2532
      %v2534 = vrot.slane %v1955, %v2533
      %v2535 = vadd.s32 %v2530, 4294967288
      %v2536 = vlaneseq
      %v2537 = vshrl.u32 %v2536, 7
      %v2538 = vsub.s32 %v2535, %v2537
      %v2539 = vrot.slane %v1958, %v2538
      %vm2540 = vcmask 130112
      %v2541 = vsel %vm2540, %v2539, %v2534
      %v2542 = vadd.s32 %v2530, 4294967280
      %v2543 = vlaneseq
      %v2544 = vshrl.u32 %v2543, 7
      %v2545 = vsub.s32 %v2542, %v2544
      %v2546 = vrot.slane %v1961, %v2545
      %vm2547 = vcmask 195712
      %v2548 = vsel %vm2547, %v2546, %v2541
      %v2549 = vadd.s32 %v2530, 4294967272
      %v2550 = vlaneseq
      %v2551 = vshrl.u32 %v2550, 7
      %v2552 = vsub.s32 %v2549, %v2551
      %v2553 = vrot.slane %v1964, %v2552
      %vm2554 = vcmask 261312
      %v2555 = vsel %vm2554, %v2553, %v2548
      %v2556 = vlaneseq
      %v2557 = vshrl.u32 %v2556, 7
      %v2558 = vsub.s32 %v2530, %v2557
      %v2559 = vrot.slane %v1967, %v2558
      %v2560 = vlaneseq
      %v2561 = vshrl.u32 %v2560, 7
      %v2562 = vsub.s32 %v2535, %v2561
      %v2563 = vrot.slane %v1970, %v2562
      %v2564 = vsel %vm2540, %v2563, %v2559
      %v2565 = vlaneseq
      %v2566 = vshrl.u32 %v2565, 7
      %v2567 = vsub.s32 %v2542, %v2566
      %v2568 = vrot.slane %v1973, %v2567
      %v2569 = vsel %vm2547, %v2568, %v2564
      %v2570 = vlaneseq
      %v2571 = vshrl.u32 %v2570, 7
      %v2572 = vsub.s32 %v2549, %v2571
      %v2573 = vrot.slane %v1976, %v2572
      %v2574 = vsel %vm2554, %v2573, %v2569
      %v2575 = vlaneseq
      %v2576 = vshrl.u32 %v2575, 7
      %v2577 = vsub.s32 %v2530, %v2576
      %v2578 = vrot.slane %v1979, %v2577
      %v2579 = vlaneseq
      %v2580 = vshrl.u32 %v2579, 7
      %v2581 = vsub.s32 %v2535, %v2580
      %v2582 = vrot.slane %v1982, %v2581
      %v2583 = vsel %vm2540, %v2582, %v2578
      %v2584 = vlaneseq
      %v2585 = vshrl.u32 %v2584, 7
      %v2586 = vsub.s32 %v2542, %v2585
      %v2587 = vrot.slane %v1985, %v2586
      %v2588 = vsel %vm2547, %v2587, %v2583
      %v2589 = vlaneseq
      %v2590 = vshrl.u32 %v2589, 7
      %v2591 = vsub.s32 %v2549, %v2590
      %v2592 = vrot.slane %v1988, %v2591
      %v2593 = vsel %vm2554, %v2592, %v2588
      %v2594 = vlaneseq
      %v2595 = vshrl.u32 %v2594, 7
      %v2596 = vsub.s32 %v2530, %v2595
      %v2597 = vrot.slane %v1991, %v2596
      %v2598 = vlaneseq
      %v2599 = vshrl.u32 %v2598, 7
      %v2600 = vsub.s32 %v2535, %v2599
      %v2601 = vrot.slane %v1994, %v2600
      %v2602 = vsel %vm2540, %v2601, %v2597
      %v2603 = vlaneseq
      %v2604 = vshrl.u32 %v2603, 7
      %v2605 = vsub.s32 %v2542, %v2604
      %v2606 = vrot.slane %v1997, %v2605
      %v2607 = vsel %vm2547, %v2606, %v2602
      %v2608 = vlaneseq
      %v2609 = vshrl.u32 %v2608, 7
      %v2610 = vsub.s32 %v2549, %v2609
      %v2611 = vrot.slane %v2000, %v2610
      %v2612 = vsel %vm2554, %v2611, %v2607
      %v2613 = vlaneseq
      %v2614 = vshrl.u32 %v2613, 7
      %v2615 = vsub.s32 %v2530, %v2614
      %v2616 = vrot.slane %v2003, %v2615
      %v2617 = vlaneseq
      %v2618 = vshrl.u32 %v2617, 7
      %v2619 = vsub.s32 %v2535, %v2618
      %v2620 = vrot.slane %v2006, %v2619
      %v2621 = vsel %vm2540, %v2620, %v2616
      %v2622 = vlaneseq
      %v2623 = vshrl.u32 %v2622, 7
      %v2624 = vsub.s32 %v2542, %v2623
      %v2625 = vrot.slane %v2009, %v2624
      %v2626 = vsel %vm2547, %v2625, %v2621
      %v2627 = vlaneseq
      %v2628 = vshrl.u32 %v2627, 7
      %v2629 = vsub.s32 %v2549, %v2628
      %v2630 = vrot.slane %v2012, %v2629
      %v2631 = vsel %vm2554, %v2630, %v2626
      %v2632 = vlaneseq
      %v2633 = vshrl.u32 %v2632, 7
      %v2634 = vsub.s32 %v2530, %v2633
      %v2635 = vrot.slane %v2015, %v2634
      %v2636 = vlaneseq
      %v2637 = vshrl.u32 %v2636, 7
      %v2638 = vsub.s32 %v2535, %v2637
      %v2639 = vrot.slane %v2018, %v2638
      %v2640 = vsel %vm2540, %v2639, %v2635
      %v2641 = vlaneseq
      %v2642 = vshrl.u32 %v2641, 7
      %v2643 = vsub.s32 %v2542, %v2642
      %v2644 = vrot.slane %v2021, %v2643
      %v2645 = vsel %vm2547, %v2644, %v2640
      %v2646 = vlaneseq
      %v2647 = vshrl.u32 %v2646, 7
      %v2648 = vsub.s32 %v2549, %v2647
      %v2649 = vrot.slane %v2024, %v2648
      %v2650 = vsel %vm2554, %v2649, %v2645
      %v2651 = vlaneseq
      %v2652 = vshrl.u32 %v2651, 7
      %v2653 = vsub.s32 %v2530, %v2652
      %v2654 = vrot.slane %v2027, %v2653
      %v2655 = vlaneseq
      %v2656 = vshrl.u32 %v2655, 7
      %v2657 = vsub.s32 %v2535, %v2656
      %v2658 = vrot.slane %v2030, %v2657
      %v2659 = vsel %vm2540, %v2658, %v2654
      %v2660 = vlaneseq
      %v2661 = vshrl.u32 %v2660, 7
      %v2662 = vsub.s32 %v2542, %v2661
      %v2663 = vrot.slane %v2033, %v2662
      %v2664 = vsel %vm2547, %v2663, %v2659
      %v2665 = vlaneseq
      %v2666 = vshrl.u32 %v2665, 7
      %v2667 = vsub.s32 %v2549, %v2666
      %v2668 = vrot.slane %v2036, %v2667
      %v2669 = vsel %vm2554, %v2668, %v2664
      %v2670 = vlaneseq
      %v2671 = vshrl.u32 %v2670, 7
      %v2672 = vsub.s32 %v2530, %v2671
      %v2673 = vrot.slane %v2039, %v2672
      %v2674 = vlaneseq
      %v2675 = vshrl.u32 %v2674, 7
      %v2676 = vsub.s32 %v2535, %v2675
      %v2677 = vrot.slane %v2042, %v2676
      %v2678 = vsel %vm2540, %v2677, %v2673
      %v2679 = vlaneseq
      %v2680 = vshrl.u32 %v2679, 7
      %v2681 = vsub.s32 %v2542, %v2680
      %v2682 = vrot.slane %v2045, %v2681
      %v2683 = vsel %vm2547, %v2682, %v2678
      %v2684 = vlaneseq
      %v2685 = vshrl.u32 %v2684, 7
      %v2686 = vsub.s32 %v2549, %v2685
      %v2687 = vrot.slane %v2048, %v2686
      %v2688 = vsel %vm2554, %v2687, %v2683
      %v2689 = vlaneseq
      %v2690 = vshrl.u32 %v2689, 7
      %v2691 = vsub.s32 %v2530, %v2690
      %v2692 = vrot.slane %v2051, %v2691
      %v2693 = vlaneseq
      %v2694 = vshrl.u32 %v2693, 7
      %v2695 = vsub.s32 %v2535, %v2694
      %v2696 = vrot.slane %v2054, %v2695
      %v2697 = vsel %vm2540, %v2696, %v2692
      %v2698 = vlaneseq
      %v2699 = vshrl.u32 %v2698, 7
      %v2700 = vsub.s32 %v2542, %v2699
      %v2701 = vrot.slane %v2057, %v2700
      %v2702 = vsel %vm2547, %v2701, %v2697
      %v2703 = vlaneseq
      %v2704 = vshrl.u32 %v2703, 7
      %v2705 = vsub.s32 %v2549, %v2704
      %v2706 = vrot.slane %v2060, %v2705
      %v2707 = vsel %vm2554, %v2706, %v2702
      %v2708 = vlaneseq
      %v2709 = vshrl.u32 %v2708, 7
      %v2710 = vsub.s32 %v2530, %v2709
      %v2711 = vrot.slane %v2063, %v2710
      %v2712 = vlaneseq
      %v2713 = vshrl.u32 %v2712, 7
      %v2714 = vsub.s32 %v2535, %v2713
      %v2715 = vrot.slane %v2066, %v2714
      %v2716 = vsel %vm2540, %v2715, %v2711
      %v2717 = vlaneseq
      %v2718 = vshrl.u32 %v2717, 7
      %v2719 = vsub.s32 %v2542, %v2718
      %v2720 = vrot.slane %v2069, %v2719
      %v2721 = vsel %vm2547, %v2720, %v2716
      %v2722 = vlaneseq
      %v2723 = vshrl.u32 %v2722, 7
      %v2724 = vsub.s32 %v2549, %v2723
      %v2725 = vrot.slane %v2072, %v2724
      %v2726 = vsel %vm2554, %v2725, %v2721
      %v2727 = vlaneseq
      %v2728 = vshrl.u32 %v2727, 7
      %v2729 = vsub.s32 %v2530, %v2728
      %v2730 = vrot.slane %v2075, %v2729
      %v2731 = vlaneseq
      %v2732 = vshrl.u32 %v2731, 7
      %v2733 = vsub.s32 %v2535, %v2732
      %v2734 = vrot.slane %v2078, %v2733
      %v2735 = vsel %vm2540, %v2734, %v2730
      %v2736 = vlaneseq
      %v2737 = vshrl.u32 %v2736, 7
      %v2738 = vsub.s32 %v2542, %v2737
      %v2739 = vrot.slane %v2081, %v2738
      %v2740 = vsel %vm2547, %v2739, %v2735
      %v2741 = vlaneseq
      %v2742 = vshrl.u32 %v2741, 7
      %v2743 = vsub.s32 %v2549, %v2742
      %v2744 = vrot.slane %v2084, %v2743
      %v2745 = vsel %vm2554, %v2744, %v2740
      %v2746 = vlaneseq
      %v2747 = vshrl.u32 %v2746, 7
      %v2748 = vsub.s32 %v2530, %v2747
      %v2749 = vrot.slane %v2087, %v2748
      %v2750 = vlaneseq
      %v2751 = vshrl.u32 %v2750, 7
      %v2752 = vsub.s32 %v2535, %v2751
      %v2753 = vrot.slane %v2090, %v2752
      %v2754 = vsel %vm2540, %v2753, %v2749
      %v2755 = vlaneseq
      %v2756 = vshrl.u32 %v2755, 7
      %v2757 = vsub.s32 %v2542, %v2756
      %v2758 = vrot.slane %v2093, %v2757
      %v2759 = vsel %vm2547, %v2758, %v2754
      %v2760 = vlaneseq
      %v2761 = vshrl.u32 %v2760, 7
      %v2762 = vsub.s32 %v2549, %v2761
      %v2763 = vrot.slane %v2096, %v2762
      %v2764 = vsel %vm2554, %v2763, %v2759
      %v2765 = vlaneseq
      %v2766 = vshrl.u32 %v2765, 7
      %v2767 = vsub.s32 %v2530, %v2766
      %v2768 = vrot.slane %v2099, %v2767
      %v2769 = vlaneseq
      %v2770 = vshrl.u32 %v2769, 7
      %v2771 = vsub.s32 %v2535, %v2770
      %v2772 = vrot.slane %v2102, %v2771
      %v2773 = vsel %vm2540, %v2772, %v2768
      %v2774 = vlaneseq
      %v2775 = vshrl.u32 %v2774, 7
      %v2776 = vsub.s32 %v2542, %v2775
      %v2777 = vrot.slane %v2105, %v2776
      %v2778 = vsel %vm2547, %v2777, %v2773
      %v2779 = vlaneseq
      %v2780 = vshrl.u32 %v2779, 7
      %v2781 = vsub.s32 %v2549, %v2780
      %v2782 = vrot.slane %v2108, %v2781
      %v2783 = vsel %vm2554, %v2782, %v2778
      %v2784 = vlaneseq
      %v2785 = vshrl.u32 %v2784, 7
      %v2786 = vsub.s32 %v2530, %v2785
      %v2787 = vrot.slane %v2111, %v2786
      %v2788 = vlaneseq
      %v2789 = vshrl.u32 %v2788, 7
      %v2790 = vsub.s32 %v2535, %v2789
      %v2791 = vrot.slane %v2114, %v2790
      %v2792 = vsel %vm2540, %v2791, %v2787
      %v2793 = vlaneseq
      %v2794 = vshrl.u32 %v2793, 7
      %v2795 = vsub.s32 %v2542, %v2794
      %v2796 = vrot.slane %v2117, %v2795
      %v2797 = vsel %vm2547, %v2796, %v2792
      %v2798 = vlaneseq
      %v2799 = vshrl.u32 %v2798, 7
      %v2800 = vsub.s32 %v2549, %v2799
      %v2801 = vrot.slane %v2120, %v2800
      %v2802 = vsel %vm2554, %v2801, %v2797
      %v2803 = vlaneseq
      %v2804 = vshrl.u32 %v2803, 7
      %v2805 = vsub.s32 %v2530, %v2804
      %v2806 = vrot.slane %v2123, %v2805
      %v2807 = vlaneseq
      %v2808 = vshrl.u32 %v2807, 7
      %v2809 = vsub.s32 %v2535, %v2808
      %v2810 = vrot.slane %v2126, %v2809
      %v2811 = vsel %vm2540, %v2810, %v2806
      %v2812 = vlaneseq
      %v2813 = vshrl.u32 %v2812, 7
      %v2814 = vsub.s32 %v2542, %v2813
      %v2815 = vrot.slane %v2129, %v2814
      %v2816 = vsel %vm2547, %v2815, %v2811
      %v2817 = vlaneseq
      %v2818 = vshrl.u32 %v2817, 7
      %v2819 = vsub.s32 %v2549, %v2818
      %v2820 = vrot.slane %v2132, %v2819
      %v2821 = vsel %vm2554, %v2820, %v2816
      %v2822 = vlaneseq
      %v2823 = vshrl.u32 %v2822, 7
      %v2824 = vsub.s32 %v2530, %v2823
      %v2825 = vrot.slane %v2135, %v2824
      %v2826 = vlaneseq
      %v2827 = vshrl.u32 %v2826, 7
      %v2828 = vsub.s32 %v2535, %v2827
      %v2829 = vrot.slane %v2138, %v2828
      %v2830 = vsel %vm2540, %v2829, %v2825
      %v2831 = vlaneseq
      %v2832 = vshrl.u32 %v2831, 7
      %v2833 = vsub.s32 %v2542, %v2832
      %v2834 = vrot.slane %v2141, %v2833
      %v2835 = vsel %vm2547, %v2834, %v2830
      %v2836 = vlaneseq
      %v2837 = vshrl.u32 %v2836, 7
      %v2838 = vsub.s32 %v2549, %v2837
      %v2839 = vrot.slane %v2144, %v2838
      %v2840 = vsel %vm2554, %v2839, %v2835
      %v2841 = vlaneseq
      %v2842 = vshrl.u32 %v2841, 7
      %v2843 = vsub.s32 %v2530, %v2842
      %v2844 = vrot.slane %v2147, %v2843
      %v2845 = vlaneseq
      %v2846 = vshrl.u32 %v2845, 7
      %v2847 = vsub.s32 %v2535, %v2846
      %v2848 = vrot.slane %v2150, %v2847
      %v2849 = vsel %vm2540, %v2848, %v2844
      %v2850 = vlaneseq
      %v2851 = vshrl.u32 %v2850, 7
      %v2852 = vsub.s32 %v2542, %v2851
      %v2853 = vrot.slane %v2153, %v2852
      %v2854 = vsel %vm2547, %v2853, %v2849
      %v2855 = vlaneseq
      %v2856 = vshrl.u32 %v2855, 7
      %v2857 = vsub.s32 %v2549, %v2856
      %v2858 = vrot.slane %v2156, %v2857
      %v2859 = vsel %vm2554, %v2858, %v2854
      %v2860 = vlaneseq
      %v2861 = vshrl.u32 %v2860, 7
      %v2862 = vsub.s32 %v2530, %v2861
      %v2863 = vrot.slane %v2159, %v2862
      %v2864 = vlaneseq
      %v2865 = vshrl.u32 %v2864, 7
      %v2866 = vsub.s32 %v2535, %v2865
      %v2867 = vrot.slane %v2162, %v2866
      %v2868 = vsel %vm2540, %v2867, %v2863
      %v2869 = vlaneseq
      %v2870 = vshrl.u32 %v2869, 7
      %v2871 = vsub.s32 %v2542, %v2870
      %v2872 = vrot.slane %v2165, %v2871
      %v2873 = vsel %vm2547, %v2872, %v2868
      %v2874 = vlaneseq
      %v2875 = vshrl.u32 %v2874, 7
      %v2876 = vsub.s32 %v2549, %v2875
      %v2877 = vrot.slane %v2168, %v2876
      %v2878 = vsel %vm2554, %v2877, %v2873
      %v2879 = vlaneseq
      %v2880 = vshrl.u32 %v2879, 7
      %v2881 = vsub.s32 %v2530, %v2880
      %v2882 = vrot.slane %v2171, %v2881
      %v2883 = vlaneseq
      %v2884 = vshrl.u32 %v2883, 7
      %v2885 = vsub.s32 %v2535, %v2884
      %v2886 = vrot.slane %v2174, %v2885
      %v2887 = vsel %vm2540, %v2886, %v2882
      %v2888 = vlaneseq
      %v2889 = vshrl.u32 %v2888, 7
      %v2890 = vsub.s32 %v2542, %v2889
      %v2891 = vrot.slane %v2177, %v2890
      %v2892 = vsel %vm2547, %v2891, %v2887
      %v2893 = vlaneseq
      %v2894 = vshrl.u32 %v2893, 7
      %v2895 = vsub.s32 %v2549, %v2894
      %v2896 = vrot.slane %v2180, %v2895
      %v2897 = vsel %vm2554, %v2896, %v2892
      %v2898 = vlaneseq
      %v2899 = vshrl.u32 %v2898, 7
      %v2900 = vsub.s32 %v2530, %v2899
      %v2901 = vrot.slane %v2183, %v2900
      %v2902 = vlaneseq
      %v2903 = vshrl.u32 %v2902, 7
      %v2904 = vsub.s32 %v2535, %v2903
      %v2905 = vrot.slane %v2186, %v2904
      %v2906 = vsel %vm2540, %v2905, %v2901
      %v2907 = vlaneseq
      %v2908 = vshrl.u32 %v2907, 7
      %v2909 = vsub.s32 %v2542, %v2908
      %v2910 = vrot.slane %v2189, %v2909
      %v2911 = vsel %vm2547, %v2910, %v2906
      %v2912 = vlaneseq
      %v2913 = vshrl.u32 %v2912, 7
      %v2914 = vsub.s32 %v2549, %v2913
      %v2915 = vrot.slane %v2192, %v2914
      %v2916 = vsel %vm2554, %v2915, %v2911
      %v2917 = vlaneseq
      %v2918 = vshrl.u32 %v2917, 7
      %v2919 = vsub.s32 %v2530, %v2918
      %v2920 = vrot.slane %v2195, %v2919
      %v2921 = vlaneseq
      %v2922 = vshrl.u32 %v2921, 7
      %v2923 = vsub.s32 %v2535, %v2922
      %v2924 = vrot.slane %v2198, %v2923
      %v2925 = vsel %vm2540, %v2924, %v2920
      %v2926 = vlaneseq
      %v2927 = vshrl.u32 %v2926, 7
      %v2928 = vsub.s32 %v2542, %v2927
      %v2929 = vrot.slane %v2201, %v2928
      %v2930 = vsel %vm2547, %v2929, %v2925
      %v2931 = vlaneseq
      %v2932 = vshrl.u32 %v2931, 7
      %v2933 = vsub.s32 %v2549, %v2932
      %v2934 = vrot.slane %v2204, %v2933
      %v2935 = vsel %vm2554, %v2934, %v2930
      %v2936 = vlaneseq
      %v2937 = vshrl.u32 %v2936, 7
      %v2938 = vsub.s32 %v2530, %v2937
      %v2939 = vrot.slane %v2207, %v2938
      %v2940 = vlaneseq
      %v2941 = vshrl.u32 %v2940, 7
      %v2942 = vsub.s32 %v2535, %v2941
      %v2943 = vrot.slane %v2210, %v2942
      %v2944 = vsel %vm2540, %v2943, %v2939
      %v2945 = vlaneseq
      %v2946 = vshrl.u32 %v2945, 7
      %v2947 = vsub.s32 %v2542, %v2946
      %v2948 = vrot.slane %v2213, %v2947
      %v2949 = vsel %vm2547, %v2948, %v2944
      %v2950 = vlaneseq
      %v2951 = vshrl.u32 %v2950, 7
      %v2952 = vsub.s32 %v2549, %v2951
      %v2953 = vrot.slane %v2216, %v2952
      %v2954 = vsel %vm2554, %v2953, %v2949
      %v2955 = vlaneseq
      %v2956 = vshrl.u32 %v2955, 7
      %v2957 = vsub.s32 %v2530, %v2956
      %v2958 = vrot.slane %v2219, %v2957
      %v2959 = vlaneseq
      %v2960 = vshrl.u32 %v2959, 7
      %v2961 = vsub.s32 %v2535, %v2960
      %v2962 = vrot.slane %v2222, %v2961
      %v2963 = vsel %vm2540, %v2962, %v2958
      %v2964 = vlaneseq
      %v2965 = vshrl.u32 %v2964, 7
      %v2966 = vsub.s32 %v2542, %v2965
      %v2967 = vrot.slane %v2225, %v2966
      %v2968 = vsel %vm2547, %v2967, %v2963
      %v2969 = vlaneseq
      %v2970 = vshrl.u32 %v2969, 7
      %v2971 = vsub.s32 %v2549, %v2970
      %v2972 = vrot.slane %v2228, %v2971
      %v2973 = vsel %vm2554, %v2972, %v2968
      %v2974 = vlaneseq
      %v2975 = vshrl.u32 %v2974, 7
      %v2976 = vsub.s32 %v2530, %v2975
      %v2977 = vrot.slane %v2231, %v2976
      %v2978 = vlaneseq
      %v2979 = vshrl.u32 %v2978, 7
      %v2980 = vsub.s32 %v2535, %v2979
      %v2981 = vrot.slane %v2234, %v2980
      %v2982 = vsel %vm2540, %v2981, %v2977
      %v2983 = vlaneseq
      %v2984 = vshrl.u32 %v2983, 7
      %v2985 = vsub.s32 %v2542, %v2984
      %v2986 = vrot.slane %v2237, %v2985
      %v2987 = vsel %vm2547, %v2986, %v2982
      %v2988 = vlaneseq
      %v2989 = vshrl.u32 %v2988, 7
      %v2990 = vsub.s32 %v2549, %v2989
      %v2991 = vrot.slane %v2240, %v2990
      %v2992 = vsel %vm2554, %v2991, %v2987
      %v2993 = vlaneseq
      %v2994 = vshrl.u32 %v2993, 7
      %v2995 = vsub.s32 %v2530, %v2994
      %v2996 = vrot.slane %v2243, %v2995
      %v2997 = vlaneseq
      %v2998 = vshrl.u32 %v2997, 7
      %v2999 = vsub.s32 %v2535, %v2998
      %v3000 = vrot.slane %v2246, %v2999
      %v3001 = vsel %vm2540, %v3000, %v2996
      %v3002 = vlaneseq
      %v3003 = vshrl.u32 %v3002, 7
      %v3004 = vsub.s32 %v2542, %v3003
      %v3005 = vrot.slane %v2249, %v3004
      %v3006 = vsel %vm2547, %v3005, %v3001
      %v3007 = vlaneseq
      %v3008 = vshrl.u32 %v3007, 7
      %v3009 = vsub.s32 %v2549, %v3008
      %v3010 = vrot.slane %v2252, %v3009
      %v3011 = vsel %vm2554, %v3010, %v3006
      %v3012 = vlaneseq
      %v3013 = vshrl.u32 %v3012, 7
      %v3014 = vsub.s32 %v2530, %v3013
      %v3015 = vrot.slane %v2255, %v3014
      %v3016 = vlaneseq
      %v3017 = vshrl.u32 %v3016, 7
      %v3018 = vsub.s32 %v2535, %v3017
      %v3019 = vrot.slane %v2258, %v3018
      %v3020 = vsel %vm2540, %v3019, %v3015
      %v3021 = vlaneseq
      %v3022 = vshrl.u32 %v3021, 7
      %v3023 = vsub.s32 %v2542, %v3022
      %v3024 = vrot.slane %v2261, %v3023
      %v3025 = vsel %vm2547, %v3024, %v3020
      %v3026 = vlaneseq
      %v3027 = vshrl.u32 %v3026, 7
      %v3028 = vsub.s32 %v2549, %v3027
      %v3029 = vrot.slane %v2264, %v3028
      %v3030 = vsel %vm2554, %v3029, %v3025
      %v3031 = vlaneseq
      %v3032 = vshrl.u32 %v3031, 7
      %v3033 = vsub.s32 %v2530, %v3032
      %v3034 = vrot.slane %v2267, %v3033
      %v3035 = vlaneseq
      %v3036 = vshrl.u32 %v3035, 7
      %v3037 = vsub.s32 %v2535, %v3036
      %v3038 = vrot.slane %v2270, %v3037
      %v3039 = vsel %vm2540, %v3038, %v3034
      %v3040 = vlaneseq
      %v3041 = vshrl.u32 %v3040, 7
      %v3042 = vsub.s32 %v2542, %v3041
      %v3043 = vrot.slane %v2273, %v3042
      %v3044 = vsel %vm2547, %v3043, %v3039
      %v3045 = vlaneseq
      %v3046 = vshrl.u32 %v3045, 7
      %v3047 = vsub.s32 %v2549, %v3046
      %v3048 = vrot.slane %v2276, %v3047
      %v3049 = vsel %vm2554, %v3048, %v3044
      %v3050 = vlaneseq
      %v3051 = vshrl.u32 %v3050, 7
      %v3052 = vsub.s32 %v2530, %v3051
      %v3053 = vrot.slane %v2279, %v3052
      %v3054 = vlaneseq
      %v3055 = vshrl.u32 %v3054, 7
      %v3056 = vsub.s32 %v2535, %v3055
      %v3057 = vrot.slane %v2282, %v3056
      %v3058 = vsel %vm2540, %v3057, %v3053
      %v3059 = vlaneseq
      %v3060 = vshrl.u32 %v3059, 7
      %v3061 = vsub.s32 %v2542, %v3060
      %v3062 = vrot.slane %v2285, %v3061
      %v3063 = vsel %vm2547, %v3062, %v3058
      %v3064 = vlaneseq
      %v3065 = vshrl.u32 %v3064, 7
      %v3066 = vsub.s32 %v2549, %v3065
      %v3067 = vrot.slane %v2288, %v3066
      %v3068 = vsel %vm2554, %v3067, %v3063
      %v3069 = vlaneseq
      %v3070 = vshrl.u32 %v3069, 7
      %v3071 = vsub.s32 %v2530, %v3070
      %v3072 = vrot.slane %v2291, %v3071
      %v3073 = vlaneseq
      %v3074 = vshrl.u32 %v3073, 7
      %v3075 = vsub.s32 %v2535, %v3074
      %v3076 = vrot.slane %v2294, %v3075
      %v3077 = vsel %vm2540, %v3076, %v3072
      %v3078 = vlaneseq
      %v3079 = vshrl.u32 %v3078, 7
      %v3080 = vsub.s32 %v2542, %v3079
      %v3081 = vrot.slane %v2297, %v3080
      %v3082 = vsel %vm2547, %v3081, %v3077
      %v3083 = vlaneseq
      %v3084 = vshrl.u32 %v3083, 7
      %v3085 = vsub.s32 %v2549, %v3084
      %v3086 = vrot.slane %v2300, %v3085
      %v3087 = vsel %vm2554, %v3086, %v3082
      %v3088 = vlaneseq
      %v3089 = vshrl.u32 %v3088, 7
      %v3090 = vsub.s32 %v2530, %v3089
      %v3091 = vrot.slane %v2303, %v3090
      %v3092 = vlaneseq
      %v3093 = vshrl.u32 %v3092, 7
      %v3094 = vsub.s32 %v2535, %v3093
      %v3095 = vrot.slane %v2306, %v3094
      %v3096 = vsel %vm2540, %v3095, %v3091
      %v3097 = vlaneseq
      %v3098 = vshrl.u32 %v3097, 7
      %v3099 = vsub.s32 %v2542, %v3098
      %v3100 = vrot.slane %v2309, %v3099
      %v3101 = vsel %vm2547, %v3100, %v3096
      %v3102 = vlaneseq
      %v3103 = vshrl.u32 %v3102, 7
      %v3104 = vsub.s32 %v2549, %v3103
      %v3105 = vrot.slane %v2312, %v3104
      %v3106 = vsel %vm2554, %v3105, %v3101
      %v3107 = vlaneseq
      %v3108 = vshrl.u32 %v3107, 7
      %v3109 = vsub.s32 %v2530, %v3108
      %v3110 = vrot.slane %v2315, %v3109
      %v3111 = vlaneseq
      %v3112 = vshrl.u32 %v3111, 7
      %v3113 = vsub.s32 %v2535, %v3112
      %v3114 = vrot.slane %v2318, %v3113
      %v3115 = vsel %vm2540, %v3114, %v3110
      %v3116 = vlaneseq
      %v3117 = vshrl.u32 %v3116, 7
      %v3118 = vsub.s32 %v2542, %v3117
      %v3119 = vrot.slane %v2321, %v3118
      %v3120 = vsel %vm2547, %v3119, %v3115
      %v3121 = vlaneseq
      %v3122 = vshrl.u32 %v3121, 7
      %v3123 = vsub.s32 %v2549, %v3122
      %v3124 = vrot.slane %v2324, %v3123
      %v3125 = vsel %vm2554, %v3124, %v3120
      %v3126 = vlaneseq
      %v3127 = vshrl.u32 %v3126, 7
      %v3128 = vsub.s32 %v2530, %v3127
      %v3129 = vrot.slane %v2327, %v3128
      %v3130 = vlaneseq
      %v3131 = vshrl.u32 %v3130, 7
      %v3132 = vsub.s32 %v2535, %v3131
      %v3133 = vrot.slane %v2330, %v3132
      %v3134 = vsel %vm2540, %v3133, %v3129
      %v3135 = vlaneseq
      %v3136 = vshrl.u32 %v3135, 7
      %v3137 = vsub.s32 %v2542, %v3136
      %v3138 = vrot.slane %v2333, %v3137
      %v3139 = vsel %vm2547, %v3138, %v3134
      %v3140 = vlaneseq
      %v3141 = vshrl.u32 %v3140, 7
      %v3142 = vsub.s32 %v2549, %v3141
      %v3143 = vrot.slane %v2336, %v3142
      %v3144 = vsel %vm2554, %v3143, %v3139
      %v3145 = vlaneseq
      %v3146 = vshrl.u32 %v3145, 7
      %v3147 = vsub.s32 %v2530, %v3146
      %v3148 = vrot.slane %v2339, %v3147
      %v3149 = vlaneseq
      %v3150 = vshrl.u32 %v3149, 7
      %v3151 = vsub.s32 %v2535, %v3150
      %v3152 = vrot.slane %v2342, %v3151
      %v3153 = vsel %vm2540, %v3152, %v3148
      %v3154 = vlaneseq
      %v3155 = vshrl.u32 %v3154, 7
      %v3156 = vsub.s32 %v2542, %v3155
      %v3157 = vrot.slane %v2345, %v3156
      %v3158 = vsel %vm2547, %v3157, %v3153
      %v3159 = vlaneseq
      %v3160 = vshrl.u32 %v3159, 7
      %v3161 = vsub.s32 %v2549, %v3160
      %v3162 = vrot.slane %v2348, %v3161
      %v3163 = vsel %vm2554, %v3162, %v3158
      %v3164 = vlaneseq
      %v3165 = vshrl.u32 %v3164, 7
      %v3166 = vsub.s32 %v2530, %v3165
      %v3167 = vrot.slane %v2351, %v3166
      %v3168 = vlaneseq
      %v3169 = vshrl.u32 %v3168, 7
      %v3170 = vsub.s32 %v2535, %v3169
      %v3171 = vrot.slane %v2354, %v3170
      %v3172 = vsel %vm2540, %v3171, %v3167
      %v3173 = vlaneseq
      %v3174 = vshrl.u32 %v3173, 7
      %v3175 = vsub.s32 %v2542, %v3174
      %v3176 = vrot.slane %v2357, %v3175
      %v3177 = vsel %vm2547, %v3176, %v3172
      %v3178 = vlaneseq
      %v3179 = vshrl.u32 %v3178, 7
      %v3180 = vsub.s32 %v2549, %v3179
      %v3181 = vrot.slane %v2360, %v3180
      %v3182 = vsel %vm2554, %v3181, %v3177
      %v3183 = vlaneseq
      %v3184 = vshrl.u32 %v3183, 7
      %v3185 = vsub.s32 %v2530, %v3184
      %v3186 = vrot.slane %v2363, %v3185
      %v3187 = vlaneseq
      %v3188 = vshrl.u32 %v3187, 7
      %v3189 = vsub.s32 %v2535, %v3188
      %v3190 = vrot.slane %v2366, %v3189
      %v3191 = vsel %vm2540, %v3190, %v3186
      %v3192 = vlaneseq
      %v3193 = vshrl.u32 %v3192, 7
      %v3194 = vsub.s32 %v2542, %v3193
      %v3195 = vrot.slane %v2369, %v3194
      %v3196 = vsel %vm2547, %v3195, %v3191
      %v3197 = vlaneseq
      %v3198 = vshrl.u32 %v3197, 7
      %v3199 = vsub.s32 %v2549, %v3198
      %v3200 = vrot.slane %v2372, %v3199
      %v3201 = vsel %vm2554, %v3200, %v3196
      %v3202 = vlaneseq
      %v3203 = vshrl.u32 %v3202, 7
      %v3204 = vsub.s32 %v2530, %v3203
      %v3205 = vrot.slane %v2375, %v3204
      %v3206 = vlaneseq
      %v3207 = vshrl.u32 %v3206, 7
      %v3208 = vsub.s32 %v2535, %v3207
      %v3209 = vrot.slane %v2378, %v3208
      %v3210 = vsel %vm2540, %v3209, %v3205
      %v3211 = vlaneseq
      %v3212 = vshrl.u32 %v3211, 7
      %v3213 = vsub.s32 %v2542, %v3212
      %v3214 = vrot.slane %v2381, %v3213
      %v3215 = vsel %vm2547, %v3214, %v3210
      %v3216 = vlaneseq
      %v3217 = vshrl.u32 %v3216, 7
      %v3218 = vsub.s32 %v2549, %v3217
      %v3219 = vrot.slane %v2384, %v3218
      %v3220 = vsel %vm2554, %v3219, %v3215
      %vm3221 = vcmask 1041409
      %v3222 = vsel %vm3221, %v2574, %v2555
      %vm3223 = vcmask 1042434
      %v3224 = vsel %vm3223, %v2593, %v3222
      %vm3225 = vcmask 1043459
      %v3226 = vsel %vm3225, %v2612, %v3224
      %vm3227 = vcmask 1044484
      %v3228 = vsel %vm3227, %v2631, %v3226
      %vm3229 = vcmask 1045509
      %v3230 = vsel %vm3229, %v2650, %v3228
      %vm3231 = vcmask 1046534
      %v3232 = vsel %vm3231, %v2669, %v3230
      %vm3233 = vcmask 1047559
      %v3234 = vsel %vm3233, %v2688, %v3232
      %v3235 = vsel %vm3221, %v2726, %v2707
      %v3236 = vsel %vm3223, %v2745, %v3235
      %v3237 = vsel %vm3225, %v2764, %v3236
      %v3238 = vsel %vm3227, %v2783, %v3237
      %v3239 = vsel %vm3229, %v2802, %v3238
      %v3240 = vsel %vm3231, %v2821, %v3239
      %v3241 = vsel %vm3233, %v2840, %v3240
      %v3242 = vsel %vm3221, %v2878, %v2859
      %v3243 = vsel %vm3223, %v2897, %v3242
      %v3244 = vsel %vm3225, %v2916, %v3243
      %v3245 = vsel %vm3227, %v2935, %v3244
      %v3246 = vsel %vm3229, %v2954, %v3245
      %v3247 = vsel %vm3231, %v2973, %v3246
      %v3248 = vsel %vm3233, %v2992, %v3247
      %v3249 = vsel %vm3221, %v3030, %v3011
      %v3250 = vsel %vm3223, %v3049, %v3249
      %v3251 = vsel %vm3225, %v3068, %v3250
      %v3252 = vsel %vm3227, %v3087, %v3251
      %v3253 = vsel %vm3229, %v3106, %v3252
      %v3254 = vsel %vm3231, %v3125, %v3253
      %v3255 = vsel %vm3233, %v3144, %v3254
      %v3256 = vsel %vm3221, %v3182, %v3163
      %v3257 = vsel %vm3223, %v3201, %v3256
      %v3258 = vsel %vm3225, %v3220, %v3257
      %vm3264 = vcmask 203776
      %v3265 = vsel %vm3264, %v3234, inf
      %3266 = vmin.xlane.f32.xlu0 %v3265
      %v3267 = vpop.xlane.xlu0 %3266
      %v3268 = vsel %vm3264, %v3241, inf
      %3269 = vmin.xlane.f32.xlu0 %v3268
      %v3270 = vpop.xlane.xlu0 %3269
      %v3271 = vsel %vm3264, %v3248, inf
      %3272 = vmin.xlane.f32.xlu0 %v3271
      %v3273 = vpop.xlane.xlu0 %3272
      %v3274 = vsel %vm3264, %v3255, inf
      %3275 = vmin.xlane.f32.xlu0 %v3274
      %v3276 = vpop.xlane.xlu0 %3275
      %vm3277 = vcmask 199680
      %v3278 = vsel %vm3277, %v3258, inf
      %3279 = vmin.xlane.f32.xlu0 %v3278
      %v3280 = vpop.xlane.xlu0 %3279
      %v3281 = vsub.f32 1.0, %v3267
      %v3282 = vsub.f32 1.0, %v3270
      %v3283 = vsub.f32 1.0, %v3273
      %v3284 = vsub.f32 1.0, %v3276
      %v3285 = vsub.f32 1.0, %v3280
      %v3286 = vlaneseq
      %v3287 = vshrl.u32 %v3286, 7
      %v3288 = vadd.s32 %v3287, 8
      %v3289 = vadd.s32 %v3287, 16
      %v3290 = vadd.s32 %v3287, 24
      %v3291 = vadd.s32 %v3287, 32
      %s3292 = smul.u32 %s17, 36
      %v3293 = vstv %s3292
      %v3294 = vadd.s32 %v3287, %v3293
      %v3295 = vadd.s32 %v3288, %v3293
      %v3296 = vadd.s32 %v3289, %v3293
      %v3297 = vadd.s32 %v3290, %v3293
      %v3298 = vadd.s32 %v3291, %v3293
      %vm3299 = vcmp.lt.s32.totalorder %v3294, 36
      %vm3300 = vcmp.lt.s32.totalorder %v3295, 36
      %vm3301 = vcmp.lt.s32.totalorder %v3296, 36
      %vm3302 = vcmp.lt.s32.totalorder %v3297, 36
      %vm3303 = vcmp.lt.s32.totalorder %v3298, 36
      %v3304 = vsel %vm3299, %v3281, 0.0
      %v3305 = vsel %vm3300, %v3282, 0.0
      %v3306 = vsel %vm3301, %v3283, 0.0
      %v3307 = vsel %vm3302, %v3284, 0.0
      %v3308 = vsel %vm3303, %v3285, 0.0
      %vm3309 = vcmask 1043456
      %v3310 = vsel %vm3309, %v3308, -inf
      %v3311 = vmax.f32 %v3304, %v3310
      %v3312 = vmax.f32 %v3311, %v3305
      %v3313 = vmax.f32 %v3306, %v3307
      %v3314 = vmax.f32 %v3312, %v3313
      %v3315 = vrot.slane %v3314, 4
      %v3316 = vmax.f32 %v3314, %v3315
      %v3317 = vrot.slane %v3316, 2
      %v3318 = vmax.f32 %v3316, %v3317
      %v3319 = vrot.slane %v3318, 1
      %v3320 = vmax.f32 %v3318, %v3319
      %v3321 = vld [vmem:[%s143] sm:$0x1]
      %v3322 = vmax.f32 %v3321, %v3320
      %vm3323 = vcmask 0
      %3324 = vst.msk [vmem:[%s143] sm:$0x1] %vm3323, %v3322
      %p3325 = scmp.lt.s32.totalorder %s16, 1
      %s3326 = scalar_select %p3325, %s16, 1
      %s3327 = scalar_lea.vmem %s1, %s3326
      // Predicated region
      $region29: #{tpu_custom_call.1} parent=23 // pred_check
        %p3328 = pneg %p70
      $region30: #{tpu_custom_call.1} parent=23 // pred_check_branch
        %3330 = sbr.rel (%p3328) target = $region32
      $region31: #{tpu_custom_call.1} parent=23 // pred_region
        _
      $region32: #{tpu_custom_call.1} parent=23 // pred_fallthru
        _
    $region24: #{tpu_custom_call.1} parent=5 // pred_fallthru
      _
    %p3331 = scmp.le.s32.totalorder 2, %s7
    // Predicated region
    $region33: #{tpu_custom_call.1} parent=5 // pred_check
      %p3332 = pneg %p3331
    $region34: #{tpu_custom_call.1} parent=5 // pred_check_branch
      %3334 = sbr.rel (%p3332) target = $region36
    $region35: #{tpu_custom_call.1} parent=5 // pred_region
      %s3335 = ssub.s32 %s7, 2
      // Predicated region
      $region37: #{tpu_custom_call.1} parent=35 // pred_check
        %p3336 = pneg %p76
      $region38: #{tpu_custom_call.1} parent=35 // pred_check_branch
        %3338 = sbr.rel (%p3336) target = $region40
      $region39: #{tpu_custom_call.1} parent=35 // pred_region
        %p3339 = scmp.lt.s32.totalorder %s18, 1
        %s3340 = scalar_select %p3339, %s18, 1
        %s3341 = scalar_lea.vmem %s1, %s3340
      $region40: #{tpu_custom_call.1} parent=35 // pred_fallthru
        _
    $region36: #{tpu_custom_call.1} parent=5 // pred_fallthru
      _
  $region6: #{tpu_custom_call.1} parent=0 // loop_footer
    %s11 = sadd.s32 1, %s7
  $region7: #{tpu_custom_call.1} parent=0 // loop_footer_branch
    %6 = sbr.rel target = $region3
  $region8: #{tpu_custom_call.1} parent=0 // loop_exit
    _

</llo_original>
